<compile_context>
chip_gen: v7x
topology: tpu7x:2x2x1
jax: 0.10.0
libtpu: 0.0.40
codegen_flags: <defaults>
</compile_context>

<pallas_src>
import jax
import jax.numpy as jnp
from jax.experimental import pallas as pl
from jax.experimental.pallas import tpu as pltpu


# ----------------------------------------------------------------------------
# Fused kernel: whole encoder forward on VMEM-resident operands.
#   x_ref   : [B*H, W*Cin]                 (NHWC activation, rows = (b, h))
#   shbX    : [3, B*Ho, B*H]               (per-kh batched row selection)
#   rkX     : [3, W*Cin, Wo*Cout]          (per-kh folded col-select + weights)
#   bX      : [1, Wo*Cout]                 (bias tiled over Wo)
#   eh      : [3, B, B*3]                  (per-h row gather for the fc layer)
#   wfc     : [3, 3*32, 128]               (fc weight, pre-permuted to NHWC)
#   bfc     : [1, 128]
#   out_ref : [B, 128]                     (lane-dense final store)
# ----------------------------------------------------------------------------
def _encoder_fused_kernel(x_ref, shb1, rk1, b1, shb2, rk2, b2,
                          shb3, rk3, b3, eh, wfc, bfc, out_ref):

    def conv_relu(a, shb_ref, rk_ref, b_ref):
        acc = None
        for kh in range(shb_ref.shape[0]):           # static unrolled loop (k=3)
            t = jnp.dot(a, rk_ref[kh], preferred_element_type=jnp.float32)
            t = jnp.dot(shb_ref[kh], t, preferred_element_type=jnp.float32)
            acc = t if acc is None else acc + t
        return jnp.maximum(acc + b_ref[...], 0.0)

    a = x_ref[...]                                   # [B*28, 28]
    a = conv_relu(a, shb1, rk1, b1)                  # [B*14, 14*8]
    a = conv_relu(a, shb2, rk2, b2)                  # [B*7,  7*16]
    a = conv_relu(a, shb3, rk3, b3)                  # [B*3,  3*32]

    y = None
    for hh in range(wfc.shape[0]):                   # static unrolled loop (3)
        rows = jnp.dot(eh[hh], a, preferred_element_type=jnp.float32)   # [B, 96]
        t = jnp.dot(rows, wfc[hh], preferred_element_type=jnp.float32)  # [B, 128]
        y = t if y is None else y + t
    out_ref[...] = jnp.maximum(y + bfc[...], 0.0)


# ----------------------------------------------------------------------------
# One-time parameter folding (host side, NOT in the per-forward path).
# ----------------------------------------------------------------------------
def _sel(out_size, in_size, stride, offset):
    """S[o, i] = 1 iff i == stride*o + offset (zero rows encode zero padding)."""
    o = jnp.arange(out_size)[:, None]
    i = jnp.arange(in_size)[None, :]
    return (i == stride * o + offset).astype(jnp.float32)


def _fold_conv(w, b, H, W, stride, pad, B):
    """Fold a Conv2d(OIHW weights) into (shb, rk, bias_tiled) matrices."""
    Cout, Cin, k, _ = w.shape
    Ho = (H + 2 * pad - k) // stride + 1
    Wo = (W + 2 * pad - k) // stride + 1
    eye_b = jnp.eye(B, dtype=jnp.float32)
    w = w.astype(jnp.float32)
    shb, rk = [], []
    for kh in range(k):
        sh = _sel(Ho, H, stride, kh - pad)                       # [Ho, H]
        shb.append(jnp.kron(eye_b, sh))                          # [B*Ho, B*H]
        r = jnp.zeros((W * Cin, Wo * Cout), jnp.float32)
        for kw in range(k):
            sw = _sel(Wo, W, stride, kw - pad)                   # [Wo, W]
            # kron(Sw^T, W_tap) folds W-selection with channel mixing.
            r = r + jnp.kron(sw.T, w[:, :, kh, kw].T)            # [W*Cin, Wo*Cout]
        rk.append(r)
    shb = jnp.stack(shb)                                         # [k, B*Ho, B*H]
    rk = jnp.stack(rk)                                           # [k, W*Cin, Wo*Cout]
    bt = jnp.tile(b.astype(jnp.float32), Wo)[None, :]            # [1, Wo*Cout]
    return shb, rk, bt, Ho, Wo, Cout


def prepare_fused_params(params, B, H, W, cin):
    shb1, rk1, b1, H1, W1, C1 = _fold_conv(params["c1_w"], params["c1_b"], H, W, 2, 1, B)
    shb2, rk2, b2, H2, W2, C2 = _fold_conv(params["c2_w"], params["c2_b"], H1, W1, 2, 1, B)
    shb3, rk3, b3, H3, W3, C3 = _fold_conv(params["c3_w"], params["c3_b"], H2, W2, 2, 0, B)

    # fc: torch Flatten is NCHW order (c, h, w). Pre-permute to (h, w, c) so it
    # consumes our [B*H3, W3*C3] activation directly, split per output row h.
    fc_w = params["fc_w"].astype(jnp.float32)                    # [enc, C3*H3*W3]
    enc = fc_w.shape[0]
    wfc = fc_w.reshape(enc, C3, H3, W3).transpose(2, 3, 1, 0)    # [h, w, c, enc]
    wfc = wfc.reshape(H3, W3 * C3, enc)                          # [3, 96, enc]

    eh = []
    for hh in range(H3):                                         # row gather per h
        eh.append((jnp.arange(B * H3)[None, :] ==
                   (jnp.arange(B)[:, None] * H3 + hh)).astype(jnp.float32))
    eh = jnp.stack(eh)                                           # [3, B, B*3]

    bfc = params["fc_b"].astype(jnp.float32)[None, :]            # [1, enc]

    return dict(shb1=shb1, rk1=rk1, b1=b1,
                shb2=shb2, rk2=rk2, b2=b2,
                shb3=shb3, rk3=rk3, b3=b3,
                eh=eh, wfc=wfc, bfc=bfc)


# ----------------------------------------------------------------------------
# Forward: one pallas_call, full-array VMEM blocks, no grid.
# ----------------------------------------------------------------------------
def encoder_forward(fused, x):
    B, C, H, W = x.shape
    # Single tiny layout conversion NCHW -> [B*H, W*C] (NHWC rows); everything
    # downstream stays in this layout until the final [B, enc] store.
    x_rows = jnp.transpose(x, (0, 2, 3, 1)).reshape(B * H, W * C).astype(jnp.float32)
    enc = fused["bfc"].shape[1]

    args = (x_rows,
            fused["shb1"], fused["rk1"], fused["b1"],
            fused["shb2"], fused["rk2"], fused["b2"],
            fused["shb3"], fused["rk3"], fused["b3"],
            fused["eh"], fused["wfc"], fused["bfc"])

    return pl.pallas_call(
        _encoder_fused_kernel,
        out_shape=jax.ShapeDtypeStruct((B, enc), jnp.float32),
        in_specs=[pl.BlockSpec(memory_space=pltpu.MemorySpace.VMEM)] * len(args),
        out_specs=pl.BlockSpec(memory_space=pltpu.MemorySpace.VMEM),
    )(*args)


# ----------------------------------------------------------------------------
# PyTorch-style parameters + pure-JAX reference (for silent correctness check).
# ----------------------------------------------------------------------------
def init_encoder_params(key, input_dim=1, encoded_dim=128):
    ks = jax.random.split(key, 8)

    def conv_w(k, co, ci, ksz):
        fan_in = ci * ksz * ksz
        return jax.random.normal(k, (co, ci, ksz, ksz), jnp.float32) / jnp.sqrt(fan_in)

    def lin_w(k, co, ci):
        return jax.random.normal(k, (co, ci), jnp.float32) / jnp.sqrt(ci)

    return {
        "c1_w": conv_w(ks[0], 8, input_dim, 3),
        "c1_b": 0.01 * jax.random.normal(ks[1], (8,), jnp.float32),
        "c2_w": conv_w(ks[2], 16, 8, 3),
        "c2_b": 0.01 * jax.random.normal(ks[3], (16,), jnp.float32),
        "c3_w": conv_w(ks[4], 32, 16, 3),
        "c3_b": 0.01 * jax.random.normal(ks[5], (32,), jnp.float32),
        "fc_w": lin_w(ks[6], encoded_dim, 3 * 3 * 32),
        "fc_b": 0.01 * jax.random.normal(ks[7], (encoded_dim,), jnp.float32),
    }


def encoder_reference(params, x):
    def conv(x, w, b, stride, pad):
        y = jax.lax.conv_general_dilated(
            x, w, (stride, stride), [(pad, pad), (pad, pad)],
            dimension_numbers=("NCHW", "OIHW", "NCHW"),
            precision=jax.lax.Precision.HIGHEST)
        return jnp.maximum(y + b[None, :, None, None], 0.0)

    x = conv(x, params["c1_w"], params["c1_b"], 2, 1)
    x = conv(x, params["c2_w"], params["c2_b"], 2, 1)
    x = conv(x, params["c3_w"], params["c3_b"], 2, 0)
    x = x.reshape(x.shape[0], -1)                               # torch Flatten (c,h,w)
    y = jnp.dot(x, params["fc_w"].T, precision=jax.lax.Precision.HIGHEST)
    return jnp.maximum(y + params["fc_b"], 0.0)


if __name__ == "__main__":
    key = jax.random.PRNGKey(0)
    k_param, k_x = jax.random.split(key)

    B, C, H, W = 2, 1, 28, 28           # 28x28 is implied by Flatten -> 3*3*32
    x = jax.random.normal(k_x, (B, C, H, W), jnp.float32)
    params = init_encoder_params(k_param, input_dim=C, encoded_dim=128)
    fused = prepare_fused_params(params, B=B, H=H, W=W, cin=C)

    fwd = jax.jit(encoder_forward)
    out = jax.block_until_ready(fwd(fused, x))

    ref = jax.block_until_ready(encoder_reference(params, x))
    assert out.shape == (B, 128), out.shape
    assert jnp.allclose(out, ref, atol=1e-3, rtol=1e-3), \
        float(jnp.max(jnp.abs(out - ref)))

    print("KERNEL_OK")
</pallas_src>

<mosaic_0001>
module attributes {stable_mosaic.version = 11 : i64} {
  func.func @_encoder_fused_kernel(%arg0: memref<56x28xf32, #tpu.memory_space<vmem>>, %arg1: memref<3x28x56xf32, #tpu.memory_space<vmem>>, %arg2: memref<3x28x112xf32, #tpu.memory_space<vmem>>, %arg3: memref<1x112xf32, #tpu.memory_space<vmem>>, %arg4: memref<3x14x28xf32, #tpu.memory_space<vmem>>, %arg5: memref<3x112x112xf32, #tpu.memory_space<vmem>>, %arg6: memref<1x112xf32, #tpu.memory_space<vmem>>, %arg7: memref<3x6x14xf32, #tpu.memory_space<vmem>>, %arg8: memref<3x112x96xf32, #tpu.memory_space<vmem>>, %arg9: memref<1x96xf32, #tpu.memory_space<vmem>>, %arg10: memref<3x2x6xf32, #tpu.memory_space<vmem>>, %arg11: memref<3x96x128xf32, #tpu.memory_space<vmem>>, %arg12: memref<1x128xf32, #tpu.memory_space<vmem>>, %arg13: memref<2x128xf32, #tpu.memory_space<vmem>>) attributes {dimension_semantics = [], scalar_prefetch = 0 : i64, scratch_operands = 0 : i64, tpu.core_type = #tpu.core_type<tc>} {
    %c0 = arith.constant 0 : index
    %c0_0 = arith.constant 0 : index
    %0 = vector.load %arg0[%c0, %c0_0] : memref<56x28xf32, #tpu.memory_space<vmem>>, vector<56x28xf32>
    %c0_1 = arith.constant 0 : index
    %c0_2 = arith.constant 0 : index
    %c0_3 = arith.constant 0 : index
    %1 = vector.load %arg2[%c0_1, %c0_2, %c0_3] : memref<3x28x112xf32, #tpu.memory_space<vmem>>, vector<1x28x112xf32>
    %2 = vector.shape_cast %1 : vector<1x28x112xf32> to vector<28x112xf32>
    %cst = arith.constant dense<0.000000e+00> : vector<56x112xf32>
    %3 = tpu.matmul %0, %2, %cst {dimension_numbers = #tpu.dot_dimension_numbers<[1], [0], [0], [1], [0, 0, 1, 1], [], []>} : vector<56x28xf32>, vector<28x112xf32>, vector<56x112xf32> -> vector<56x112xf32>
    %c0_4 = arith.constant 0 : index
    %c0_5 = arith.constant 0 : index
    %c0_6 = arith.constant 0 : index
    %4 = vector.load %arg1[%c0_4, %c0_5, %c0_6] : memref<3x28x56xf32, #tpu.memory_space<vmem>>, vector<1x28x56xf32>
    %5 = vector.shape_cast %4 : vector<1x28x56xf32> to vector<28x56xf32>
    %cst_7 = arith.constant dense<0.000000e+00> : vector<28x112xf32>
    %6 = tpu.matmul %5, %3, %cst_7 {dimension_numbers = #tpu.dot_dimension_numbers<[1], [0], [0], [1], [0, 0, 1, 1], [], []>} : vector<28x56xf32>, vector<56x112xf32>, vector<28x112xf32> -> vector<28x112xf32>
    %c1 = arith.constant 1 : index
    %c0_8 = arith.constant 0 : index
    %c0_9 = arith.constant 0 : index
    %7 = vector.load %arg2[%c1, %c0_8, %c0_9] : memref<3x28x112xf32, #tpu.memory_space<vmem>>, vector<1x28x112xf32>
    %8 = vector.shape_cast %7 : vector<1x28x112xf32> to vector<28x112xf32>
    %cst_10 = arith.constant dense<0.000000e+00> : vector<56x112xf32>
    %9 = tpu.matmul %0, %8, %cst_10 {dimension_numbers = #tpu.dot_dimension_numbers<[1], [0], [0], [1], [0, 0, 1, 1], [], []>} : vector<56x28xf32>, vector<28x112xf32>, vector<56x112xf32> -> vector<56x112xf32>
    %c1_11 = arith.constant 1 : index
    %c0_12 = arith.constant 0 : index
    %c0_13 = arith.constant 0 : index
    %10 = vector.load %arg1[%c1_11, %c0_12, %c0_13] : memref<3x28x56xf32, #tpu.memory_space<vmem>>, vector<1x28x56xf32>
    %11 = vector.shape_cast %10 : vector<1x28x56xf32> to vector<28x56xf32>
    %cst_14 = arith.constant dense<0.000000e+00> : vector<28x112xf32>
    %12 = tpu.matmul %11, %9, %cst_14 {dimension_numbers = #tpu.dot_dimension_numbers<[1], [0], [0], [1], [0, 0, 1, 1], [], []>} : vector<28x56xf32>, vector<56x112xf32>, vector<28x112xf32> -> vector<28x112xf32>
    %13 = arith.addf %6, %12 : vector<28x112xf32>
    %c2 = arith.constant 2 : index
    %c0_15 = arith.constant 0 : index
    %c0_16 = arith.constant 0 : index
    %14 = vector.load %arg2[%c2, %c0_15, %c0_16] : memref<3x28x112xf32, #tpu.memory_space<vmem>>, vector<1x28x112xf32>
    %15 = vector.shape_cast %14 : vector<1x28x112xf32> to vector<28x112xf32>
    %cst_17 = arith.constant dense<0.000000e+00> : vector<56x112xf32>
    %16 = tpu.matmul %0, %15, %cst_17 {dimension_numbers = #tpu.dot_dimension_numbers<[1], [0], [0], [1], [0, 0, 1, 1], [], []>} : vector<56x28xf32>, vector<28x112xf32>, vector<56x112xf32> -> vector<56x112xf32>
    %c2_18 = arith.constant 2 : index
    %c0_19 = arith.constant 0 : index
    %c0_20 = arith.constant 0 : index
    %17 = vector.load %arg1[%c2_18, %c0_19, %c0_20] : memref<3x28x56xf32, #tpu.memory_space<vmem>>, vector<1x28x56xf32>
    %18 = vector.shape_cast %17 : vector<1x28x56xf32> to vector<28x56xf32>
    %cst_21 = arith.constant dense<0.000000e+00> : vector<28x112xf32>
    %19 = tpu.matmul %18, %16, %cst_21 {dimension_numbers = #tpu.dot_dimension_numbers<[1], [0], [0], [1], [0, 0, 1, 1], [], []>} : vector<28x56xf32>, vector<56x112xf32>, vector<28x112xf32> -> vector<28x112xf32>
    %20 = arith.addf %13, %19 : vector<28x112xf32>
    %c0_22 = arith.constant 0 : index
    %c0_23 = arith.constant 0 : index
    %21 = vector.load %arg3[%c0_22, %c0_23] : memref<1x112xf32, #tpu.memory_space<vmem>>, vector<1x112xf32>
    %22 = vector.broadcast %21 : vector<1x112xf32> to vector<28x112xf32>
    %23 = arith.addf %20, %22 : vector<28x112xf32>
    %cst_24 = arith.constant 0.000000e+00 : f32
    %24 = vector.broadcast %cst_24 : f32 to vector<28x112xf32>
    %25 = arith.maximumf %23, %24 : vector<28x112xf32>
    %c0_25 = arith.constant 0 : index
    %c0_26 = arith.constant 0 : index
    %c0_27 = arith.constant 0 : index
    %26 = vector.load %arg5[%c0_25, %c0_26, %c0_27] : memref<3x112x112xf32, #tpu.memory_space<vmem>>, vector<1x112x112xf32>
    %27 = vector.shape_cast %26 : vector<1x112x112xf32> to vector<112x112xf32>
    %cst_28 = arith.constant dense<0.000000e+00> : vector<28x112xf32>
    %28 = tpu.matmul %25, %27, %cst_28 {dimension_numbers = #tpu.dot_dimension_numbers<[1], [0], [0], [1], [0, 0, 1, 1], [], []>} : vector<28x112xf32>, vector<112x112xf32>, vector<28x112xf32> -> vector<28x112xf32>
    %c0_29 = arith.constant 0 : index
    %c0_30 = arith.constant 0 : index
    %c0_31 = arith.constant 0 : index
    %29 = vector.load %arg4[%c0_29, %c0_30, %c0_31] : memref<3x14x28xf32, #tpu.memory_space<vmem>>, vector<1x14x28xf32>
    %30 = vector.shape_cast %29 : vector<1x14x28xf32> to vector<14x28xf32>
    %cst_32 = arith.constant dense<0.000000e+00> : vector<14x112xf32>
    %31 = tpu.matmul %30, %28, %cst_32 {dimension_numbers = #tpu.dot_dimension_numbers<[1], [0], [0], [1], [0, 0, 1, 1], [], []>} : vector<14x28xf32>, vector<28x112xf32>, vector<14x112xf32> -> vector<14x112xf32>
    %c1_33 = arith.constant 1 : index
    %c0_34 = arith.constant 0 : index
    %c0_35 = arith.constant 0 : index
    %32 = vector.load %arg5[%c1_33, %c0_34, %c0_35] : memref<3x112x112xf32, #tpu.memory_space<vmem>>, vector<1x112x112xf32>
    %33 = vector.shape_cast %32 : vector<1x112x112xf32> to vector<112x112xf32>
    %cst_36 = arith.constant dense<0.000000e+00> : vector<28x112xf32>
    %34 = tpu.matmul %25, %33, %cst_36 {dimension_numbers = #tpu.dot_dimension_numbers<[1], [0], [0], [1], [0, 0, 1, 1], [], []>} : vector<28x112xf32>, vector<112x112xf32>, vector<28x112xf32> -> vector<28x112xf32>
    %c1_37 = arith.constant 1 : index
    %c0_38 = arith.constant 0 : index
    %c0_39 = arith.constant 0 : index
    %35 = vector.load %arg4[%c1_37, %c0_38, %c0_39] : memref<3x14x28xf32, #tpu.memory_space<vmem>>, vector<1x14x28xf32>
    %36 = vector.shape_cast %35 : vector<1x14x28xf32> to vector<14x28xf32>
    %cst_40 = arith.constant dense<0.000000e+00> : vector<14x112xf32>
    %37 = tpu.matmul %36, %34, %cst_40 {dimension_numbers = #tpu.dot_dimension_numbers<[1], [0], [0], [1], [0, 0, 1, 1], [], []>} : vector<14x28xf32>, vector<28x112xf32>, vector<14x112xf32> -> vector<14x112xf32>
    %38 = arith.addf %31, %37 : vector<14x112xf32>
    %c2_41 = arith.constant 2 : index
    %c0_42 = arith.constant 0 : index
    %c0_43 = arith.constant 0 : index
    %39 = vector.load %arg5[%c2_41, %c0_42, %c0_43] : memref<3x112x112xf32, #tpu.memory_space<vmem>>, vector<1x112x112xf32>
    %40 = vector.shape_cast %39 : vector<1x112x112xf32> to vector<112x112xf32>
    %cst_44 = arith.constant dense<0.000000e+00> : vector<28x112xf32>
    %41 = tpu.matmul %25, %40, %cst_44 {dimension_numbers = #tpu.dot_dimension_numbers<[1], [0], [0], [1], [0, 0, 1, 1], [], []>} : vector<28x112xf32>, vector<112x112xf32>, vector<28x112xf32> -> vector<28x112xf32>
    %c2_45 = arith.constant 2 : index
    %c0_46 = arith.constant 0 : index
    %c0_47 = arith.constant 0 : index
    %42 = vector.load %arg4[%c2_45, %c0_46, %c0_47] : memref<3x14x28xf32, #tpu.memory_space<vmem>>, vector<1x14x28xf32>
    %43 = vector.shape_cast %42 : vector<1x14x28xf32> to vector<14x28xf32>
    %cst_48 = arith.constant dense<0.000000e+00> : vector<14x112xf32>
    %44 = tpu.matmul %43, %41, %cst_48 {dimension_numbers = #tpu.dot_dimension_numbers<[1], [0], [0], [1], [0, 0, 1, 1], [], []>} : vector<14x28xf32>, vector<28x112xf32>, vector<14x112xf32> -> vector<14x112xf32>
    %45 = arith.addf %38, %44 : vector<14x112xf32>
    %c0_49 = arith.constant 0 : index
    %c0_50 = arith.constant 0 : index
    %46 = vector.load %arg6[%c0_49, %c0_50] : memref<1x112xf32, #tpu.memory_space<vmem>>, vector<1x112xf32>
    %47 = vector.broadcast %46 : vector<1x112xf32> to vector<14x112xf32>
    %48 = arith.addf %45, %47 : vector<14x112xf32>
    %cst_51 = arith.constant 0.000000e+00 : f32
    %49 = vector.broadcast %cst_51 : f32 to vector<14x112xf32>
    %50 = arith.maximumf %48, %49 : vector<14x112xf32>
    %c0_52 = arith.constant 0 : index
    %c0_53 = arith.constant 0 : index
    %c0_54 = arith.constant 0 : index
    %51 = vector.load %arg8[%c0_52, %c0_53, %c0_54] : memref<3x112x96xf32, #tpu.memory_space<vmem>>, vector<1x112x96xf32>
    %52 = vector.shape_cast %51 : vector<1x112x96xf32> to vector<112x96xf32>
    %cst_55 = arith.constant dense<0.000000e+00> : vector<14x96xf32>
    %53 = tpu.matmul %50, %52, %cst_55 {dimension_numbers = #tpu.dot_dimension_numbers<[1], [0], [0], [1], [0, 0, 1, 1], [], []>} : vector<14x112xf32>, vector<112x96xf32>, vector<14x96xf32> -> vector<14x96xf32>
    %c0_56 = arith.constant 0 : index
    %c0_57 = arith.constant 0 : index
    %c0_58 = arith.constant 0 : index
    %54 = vector.load %arg7[%c0_56, %c0_57, %c0_58] : memref<3x6x14xf32, #tpu.memory_space<vmem>>, vector<1x6x14xf32>
    %55 = vector.shape_cast %54 : vector<1x6x14xf32> to vector<6x14xf32>
    %cst_59 = arith.constant dense<0.000000e+00> : vector<6x96xf32>
    %56 = tpu.matmul %55, %53, %cst_59 {dimension_numbers = #tpu.dot_dimension_numbers<[1], [0], [0], [1], [0, 0, 1, 1], [], []>} : vector<6x14xf32>, vector<14x96xf32>, vector<6x96xf32> -> vector<6x96xf32>
    %c1_60 = arith.constant 1 : index
    %c0_61 = arith.constant 0 : index
    %c0_62 = arith.constant 0 : index
    %57 = vector.load %arg8[%c1_60, %c0_61, %c0_62] : memref<3x112x96xf32, #tpu.memory_space<vmem>>, vector<1x112x96xf32>
    %58 = vector.shape_cast %57 : vector<1x112x96xf32> to vector<112x96xf32>
    %cst_63 = arith.constant dense<0.000000e+00> : vector<14x96xf32>
    %59 = tpu.matmul %50, %58, %cst_63 {dimension_numbers = #tpu.dot_dimension_numbers<[1], [0], [0], [1], [0, 0, 1, 1], [], []>} : vector<14x112xf32>, vector<112x96xf32>, vector<14x96xf32> -> vector<14x96xf32>
    %c1_64 = arith.constant 1 : index
    %c0_65 = arith.constant 0 : index
    %c0_66 = arith.constant 0 : index
    %60 = vector.load %arg7[%c1_64, %c0_65, %c0_66] : memref<3x6x14xf32, #tpu.memory_space<vmem>>, vector<1x6x14xf32>
    %61 = vector.shape_cast %60 : vector<1x6x14xf32> to vector<6x14xf32>
    %cst_67 = arith.constant dense<0.000000e+00> : vector<6x96xf32>
    %62 = tpu.matmul %61, %59, %cst_67 {dimension_numbers = #tpu.dot_dimension_numbers<[1], [0], [0], [1], [0, 0, 1, 1], [], []>} : vector<6x14xf32>, vector<14x96xf32>, vector<6x96xf32> -> vector<6x96xf32>
    %63 = arith.addf %56, %62 : vector<6x96xf32>
    %c2_68 = arith.constant 2 : index
    %c0_69 = arith.constant 0 : index
    %c0_70 = arith.constant 0 : index
    %64 = vector.load %arg8[%c2_68, %c0_69, %c0_70] : memref<3x112x96xf32, #tpu.memory_space<vmem>>, vector<1x112x96xf32>
    %65 = vector.shape_cast %64 : vector<1x112x96xf32> to vector<112x96xf32>
    %cst_71 = arith.constant dense<0.000000e+00> : vector<14x96xf32>
    %66 = tpu.matmul %50, %65, %cst_71 {dimension_numbers = #tpu.dot_dimension_numbers<[1], [0], [0], [1], [0, 0, 1, 1], [], []>} : vector<14x112xf32>, vector<112x96xf32>, vector<14x96xf32> -> vector<14x96xf32>
    %c2_72 = arith.constant 2 : index
    %c0_73 = arith.constant 0 : index
    %c0_74 = arith.constant 0 : index
    %67 = vector.load %arg7[%c2_72, %c0_73, %c0_74] : memref<3x6x14xf32, #tpu.memory_space<vmem>>, vector<1x6x14xf32>
    %68 = vector.shape_cast %67 : vector<1x6x14xf32> to vector<6x14xf32>
    %cst_75 = arith.constant dense<0.000000e+00> : vector<6x96xf32>
    %69 = tpu.matmul %68, %66, %cst_75 {dimension_numbers = #tpu.dot_dimension_numbers<[1], [0], [0], [1], [0, 0, 1, 1], [], []>} : vector<6x14xf32>, vector<14x96xf32>, vector<6x96xf32> -> vector<6x96xf32>
    %70 = arith.addf %63, %69 : vector<6x96xf32>
    %c0_76 = arith.constant 0 : index
    %c0_77 = arith.constant 0 : index
    %71 = vector.load %arg9[%c0_76, %c0_77] : memref<1x96xf32, #tpu.memory_space<vmem>>, vector<1x96xf32>
    %72 = vector.broadcast %71 : vector<1x96xf32> to vector<6x96xf32>
    %73 = arith.addf %70, %72 : vector<6x96xf32>
    %cst_78 = arith.constant 0.000000e+00 : f32
    %74 = vector.broadcast %cst_78 : f32 to vector<6x96xf32>
    %75 = arith.maximumf %73, %74 : vector<6x96xf32>
    %c0_79 = arith.constant 0 : index
    %c0_80 = arith.constant 0 : index
    %c0_81 = arith.constant 0 : index
    %76 = vector.load %arg10[%c0_79, %c0_80, %c0_81] : memref<3x2x6xf32, #tpu.memory_space<vmem>>, vector<1x2x6xf32>
    %77 = vector.shape_cast %76 : vector<1x2x6xf32> to vector<2x6xf32>
    %cst_82 = arith.constant dense<0.000000e+00> : vector<2x96xf32>
    %78 = tpu.matmul %77, %75, %cst_82 {dimension_numbers = #tpu.dot_dimension_numbers<[1], [0], [0], [1], [0, 0, 1, 1], [], []>} : vector<2x6xf32>, vector<6x96xf32>, vector<2x96xf32> -> vector<2x96xf32>
    %c0_83 = arith.constant 0 : index
    %c0_84 = arith.constant 0 : index
    %c0_85 = arith.constant 0 : index
    %79 = vector.load %arg11[%c0_83, %c0_84, %c0_85] : memref<3x96x128xf32, #tpu.memory_space<vmem>>, vector<1x96x128xf32>
    %80 = vector.shape_cast %79 : vector<1x96x128xf32> to vector<96x128xf32>
    %cst_86 = arith.constant dense<0.000000e+00> : vector<2x128xf32>
    %81 = tpu.matmul %78, %80, %cst_86 {dimension_numbers = #tpu.dot_dimension_numbers<[1], [0], [0], [1], [0, 0, 1, 1], [], []>} : vector<2x96xf32>, vector<96x128xf32>, vector<2x128xf32> -> vector<2x128xf32>
    %c1_87 = arith.constant 1 : index
    %c0_88 = arith.constant 0 : index
    %c0_89 = arith.constant 0 : index
    %82 = vector.load %arg10[%c1_87, %c0_88, %c0_89] : memref<3x2x6xf32, #tpu.memory_space<vmem>>, vector<1x2x6xf32>
    %83 = vector.shape_cast %82 : vector<1x2x6xf32> to vector<2x6xf32>
    %cst_90 = arith.constant dense<0.000000e+00> : vector<2x96xf32>
    %84 = tpu.matmul %83, %75, %cst_90 {dimension_numbers = #tpu.dot_dimension_numbers<[1], [0], [0], [1], [0, 0, 1, 1], [], []>} : vector<2x6xf32>, vector<6x96xf32>, vector<2x96xf32> -> vector<2x96xf32>
    %c1_91 = arith.constant 1 : index
    %c0_92 = arith.constant 0 : index
    %c0_93 = arith.constant 0 : index
    %85 = vector.load %arg11[%c1_91, %c0_92, %c0_93] : memref<3x96x128xf32, #tpu.memory_space<vmem>>, vector<1x96x128xf32>
    %86 = vector.shape_cast %85 : vector<1x96x128xf32> to vector<96x128xf32>
    %cst_94 = arith.constant dense<0.000000e+00> : vector<2x128xf32>
    %87 = tpu.matmul %84, %86, %cst_94 {dimension_numbers = #tpu.dot_dimension_numbers<[1], [0], [0], [1], [0, 0, 1, 1], [], []>} : vector<2x96xf32>, vector<96x128xf32>, vector<2x128xf32> -> vector<2x128xf32>
    %88 = arith.addf %81, %87 : vector<2x128xf32>
    %c2_95 = arith.constant 2 : index
    %c0_96 = arith.constant 0 : index
    %c0_97 = arith.constant 0 : index
    %89 = vector.load %arg10[%c2_95, %c0_96, %c0_97] : memref<3x2x6xf32, #tpu.memory_space<vmem>>, vector<1x2x6xf32>
    %90 = vector.shape_cast %89 : vector<1x2x6xf32> to vector<2x6xf32>
    %cst_98 = arith.constant dense<0.000000e+00> : vector<2x96xf32>
    %91 = tpu.matmul %90, %75, %cst_98 {dimension_numbers = #tpu.dot_dimension_numbers<[1], [0], [0], [1], [0, 0, 1, 1], [], []>} : vector<2x6xf32>, vector<6x96xf32>, vector<2x96xf32> -> vector<2x96xf32>
    %c2_99 = arith.constant 2 : index
    %c0_100 = arith.constant 0 : index
    %c0_101 = arith.constant 0 : index
    %92 = vector.load %arg11[%c2_99, %c0_100, %c0_101] : memref<3x96x128xf32, #tpu.memory_space<vmem>>, vector<1x96x128xf32>
    %93 = vector.shape_cast %92 : vector<1x96x128xf32> to vector<96x128xf32>
    %cst_102 = arith.constant dense<0.000000e+00> : vector<2x128xf32>
    %94 = tpu.matmul %91, %93, %cst_102 {dimension_numbers = #tpu.dot_dimension_numbers<[1], [0], [0], [1], [0, 0, 1, 1], [], []>} : vector<2x96xf32>, vector<96x128xf32>, vector<2x128xf32> -> vector<2x128xf32>
    %95 = arith.addf %88, %94 : vector<2x128xf32>
    %c0_103 = arith.constant 0 : index
    %c0_104 = arith.constant 0 : index
    %96 = vector.load %arg12[%c0_103, %c0_104] : memref<1x128xf32, #tpu.memory_space<vmem>>, vector<1x128xf32>
    %97 = vector.broadcast %96 : vector<1x128xf32> to vector<2x128xf32>
    %98 = arith.addf %95, %97 : vector<2x128xf32>
    %cst_105 = arith.constant 0.000000e+00 : f32
    %99 = vector.broadcast %cst_105 : f32 to vector<2x128xf32>
    %100 = arith.maximumf %98, %99 : vector<2x128xf32>
    %c0_106 = arith.constant 0 : index
    %c0_107 = arith.constant 0 : index
    %101 = vector.load %arg13[%c0_106, %c0_107] : memref<2x128xf32, #tpu.memory_space<vmem>>, vector<2x128xf32>
    tpu.vector_store %arg13[%c0_106, %c0_107], %100 {strides = array<i32>} : memref<2x128xf32, #tpu.memory_space<vmem>>, vector<2x128xf32>,
    return
  }
}

</mosaic_0001>

<llo_original>
// kernel: encoder_forward.1
$region0: #{encoder_forward.1}
  #allocation0 [shape = 'u32[]', space=smem, size = 0x4, offset = 0x4, fixed_abs, tag = 'smem constant byte address 0x4 - core index']
  #allocation1 [shape = 'u32[144,128]{1,0:T(1,128)}', space=vmem, size = 0x12000, scoped, tag = 'internal scratch']
  %s0 = inlined_call_operand.hbm [shape: f32[56,28], index: 0, kind: input, shape index: {}]
  %s1 = inlined_call_operand.hbm [shape: f32[3,28,56], index: 1, kind: input, shape index: {}]
  %s2 = inlined_call_operand.hbm [shape: f32[3,28,112], index: 2, kind: input, shape index: {}]
  %s3 = inlined_call_operand.vmem [shape: f32[1,112], index: 3, kind: input, shape index: {}]
  %s4 = inlined_call_operand.hbm [shape: f32[3,14,28], index: 4, kind: input, shape index: {}]
  %s5 = inlined_call_operand.vmem [shape: f32[3,112,112], index: 5, kind: input, shape index: {}]
  %s6 = inlined_call_operand.vmem [shape: f32[1,112], index: 6, kind: input, shape index: {}]
  %s7 = inlined_call_operand.vmem [shape: f32[3,6,14], index: 7, kind: input, shape index: {}]
  %s8 = inlined_call_operand.vmem [shape: f32[3,112,96], index: 8, kind: input, shape index: {}]
  %s9 = inlined_call_operand.hbm [shape: f32[1,96], index: 9, kind: input, shape index: {}]
  %s10 = inlined_call_operand.hbm [shape: f32[3,2,6], index: 10, kind: input, shape index: {}]
  %s11 = inlined_call_operand.vmem [shape: f32[3,96,128], index: 11, kind: input, shape index: {}]
  %s12 = inlined_call_operand.hbm [shape: f32[1,128], index: 12, kind: input, shape index: {}]
  %s13 = inlined_call_operand.hbm [shape: f32[2,128], index: 13, kind: output, shape index: {}]
  %s14 = sld [smem:[#allocation0]]
  $region90: #{encoder_forward.1} parent=0
    _
  %s16 = ssub.s32 1, %s14
  %s17 = scalar_select 0, %s16, %s14
  $region1: #{encoder_forward.1} parent=0
    #allocation2 [shape = 'u8[28672]{0}', space=vmem, size = 0x7000, scoped, tag = 'input window, operand 0, single buffered']
    #allocation3 [shape = 's32[1]{0}', space=sflag, size = 0x4, scoped, tag = 'scoped memory for encoder_forward.1']
    #allocation4 [shape = 's32[1]{0}', space=sflag, size = 0x4, scoped, tag = 'scoped memory for encoder_forward.1']
    #allocation5 [shape = 'u8[49152]{0}', space=vmem, size = 0xc000, scoped, tag = 'input window, operand 1, single buffered']
    #allocation6 [shape = 's32[1]{0}', space=sflag, size = 0x4, scoped, tag = 'scoped memory for encoder_forward.1']
    #allocation7 [shape = 'u8[49152]{0}', space=vmem, size = 0xc000, scoped, tag = 'input window, operand 2, single buffered']
    #allocation8 [shape = 'u8[24576]{0}', space=vmem, size = 0x6000, scoped, tag = 'input window, operand 4, single buffered']
    #allocation9 [shape = 's32[1]{0}', space=sflag, size = 0x4, scoped, tag = 'scoped memory for encoder_forward.1']
    #allocation10 [shape = 'u8[512]{0}', space=vmem, size = 0x400, scoped, tag = 'input window, operand 9, single buffered']
    #allocation11 [shape = 'u8[3072]{0}', space=vmem, size = 0xc00, scoped, tag = 'input window, operand 10, single buffered']
    #allocation12 [shape = 's32[1]{0}', space=sflag, size = 0x4, scoped, tag = 'scoped memory for encoder_forward.1']
    #allocation13 [shape = 'u8[512]{0}', space=vmem, size = 0x400, scoped, tag = 'input window, operand 12, single buffered']
    #allocation14 [shape = 'u8[1024]{0}', space=vmem, size = 0x400, scoped, tag = 'output window, operand 0, single buffered']
    %18 = vsyncpa [#allocation3], 0
    %19 = vsyncpa [#allocation6], 0
    %20 = vsyncpa [#allocation9], 0
    %21 = vsyncpa [#allocation12], 0
    %22 = vsyncpa [#allocation4], 0
    // Predicated region
    $region2: #{encoder_forward.1} parent=1 // pred_check
      _
    $region3: #{encoder_forward.1} parent=1 // pred_check_branch
      %24 = sbr.rel (0) target = $region5
    $region4: #{encoder_forward.1} parent=1 // pred_region
      %s26 = ssub.s32 896, 896
      %27 = vsyncadd [#allocation3], %s26
      %s28 = sshll.u32 [#allocation2], 4
      %s29 = int_to_ptr.vmem [resolvable:$true] %s28
      %34 = dma.hbm_to_vmem [thread:$0]  %s0, 896, %s29, [#allocation3], 128, 128, 8
    $region5: #{encoder_forward.1} parent=1 // pred_fallthru
      _
    // Predicated region
    $region6: #{encoder_forward.1} parent=1 // pred_check
      _
    $region7: #{encoder_forward.1} parent=1 // pred_check_branch
      %36 = sbr.rel (0) target = $region9
    $region8: #{encoder_forward.1} parent=1 // pred_region
      %s38 = ssub.s32 1536, 1536
      %39 = vsyncadd [#allocation6], %s38
      %s40 = sshll.u32 [#allocation5], 4
      %s41 = int_to_ptr.vmem [resolvable:$true] %s40
      %46 = dma.hbm_to_vmem [thread:$0]  %s1, 1536, %s41, [#allocation6], 128, 128, 8
    $region9: #{encoder_forward.1} parent=1 // pred_fallthru
      _
    // Predicated region
    $region10: #{encoder_forward.1} parent=1 // pred_check
      _
    $region11: #{encoder_forward.1} parent=1 // pred_check_branch
      %48 = sbr.rel (0) target = $region13
    $region12: #{encoder_forward.1} parent=1 // pred_region
      %s50 = ssub.s32 1536, 1536
      %51 = vsyncadd [#allocation6], %s50
      %s52 = sshll.u32 [#allocation7], 4
      %s53 = int_to_ptr.vmem [resolvable:$true] %s52
      %58 = dma.hbm_to_vmem [thread:$0]  %s2, 1536, %s53, [#allocation6], 128, 128, 8
    $region13: #{encoder_forward.1} parent=1 // pred_fallthru
      _
    // Predicated region
    $region14: #{encoder_forward.1} parent=1 // pred_check
      _
    $region15: #{encoder_forward.1} parent=1 // pred_check_branch
      %60 = sbr.rel (0) target = $region17
    $region16: #{encoder_forward.1} parent=1 // pred_region
      _
    $region17: #{encoder_forward.1} parent=1 // pred_fallthru
      _
    // Predicated region
    $region18: #{encoder_forward.1} parent=1 // pred_check
      _
    $region19: #{encoder_forward.1} parent=1 // pred_check_branch
      %62 = sbr.rel (0) target = $region21
    $region20: #{encoder_forward.1} parent=1 // pred_region
      %s64 = ssub.s32 768, 768
      %65 = vsyncadd [#allocation9], %s64
      %s66 = sshll.u32 [#allocation8], 4
      %s67 = int_to_ptr.vmem [resolvable:$true] %s66
      %72 = dma.hbm_to_vmem [thread:$0]  %s4, 768, %s67, [#allocation9], 128, 128, 8
    $region21: #{encoder_forward.1} parent=1 // pred_fallthru
      _
    // Predicated region
    $region22: #{encoder_forward.1} parent=1 // pred_check
      _
    $region23: #{encoder_forward.1} parent=1 // pred_check_branch
      %74 = sbr.rel (0) target = $region25
    $region24: #{encoder_forward.1} parent=1 // pred_region
      _
    $region25: #{encoder_forward.1} parent=1 // pred_fallthru
      _
    // Predicated region
    $region26: #{encoder_forward.1} parent=1 // pred_check
      _
    $region27: #{encoder_forward.1} parent=1 // pred_check_branch
      %76 = sbr.rel (0) target = $region29
    $region28: #{encoder_forward.1} parent=1 // pred_region
      _
    $region29: #{encoder_forward.1} parent=1 // pred_fallthru
      _
    // Predicated region
    $region30: #{encoder_forward.1} parent=1 // pred_check
      _
    $region31: #{encoder_forward.1} parent=1 // pred_check_branch
      %78 = sbr.rel (0) target = $region33
    $region32: #{encoder_forward.1} parent=1 // pred_region
      _
    $region33: #{encoder_forward.1} parent=1 // pred_fallthru
      _
    // Predicated region
    $region34: #{encoder_forward.1} parent=1 // pred_check
      _
    $region35: #{encoder_forward.1} parent=1 // pred_check_branch
      %80 = sbr.rel (0) target = $region37
    $region36: #{encoder_forward.1} parent=1 // pred_region
      _
    $region37: #{encoder_forward.1} parent=1 // pred_fallthru
      _
    // Predicated region
    $region38: #{encoder_forward.1} parent=1 // pred_check
      _
    $region39: #{encoder_forward.1} parent=1 // pred_check_branch
      %82 = sbr.rel (0) target = $region41
    $region40: #{encoder_forward.1} parent=1 // pred_region
      %s84 = ssub.s32 16, 16
      %85 = vsyncadd [#allocation9], %s84
      %s87 = sshll.u32 [#allocation10], 4
      %s88 = int_to_ptr.vmem [resolvable:$true] %s87
      %90 = dma.hbm_to_vmem [thread:$0]  %s9, 16, %s88, [#allocation9]
    $region41: #{encoder_forward.1} parent=1 // pred_fallthru
      _
    // Predicated region
    $region42: #{encoder_forward.1} parent=1 // pred_check
      _
    $region43: #{encoder_forward.1} parent=1 // pred_check_branch
      %92 = sbr.rel (0) target = $region45
    $region44: #{encoder_forward.1} parent=1 // pred_region
      %s94 = ssub.s32 96, 96
      %95 = vsyncadd [#allocation12], %s94
      %s96 = sshll.u32 [#allocation11], 4
      %s97 = int_to_ptr.vmem [resolvable:$true] %s96
      %102 = dma.hbm_to_vmem [thread:$0]  %s10, 96, %s97, [#allocation12], 32, 32, 2
    $region45: #{encoder_forward.1} parent=1 // pred_fallthru
      _
    // Predicated region
    $region46: #{encoder_forward.1} parent=1 // pred_check
      _
    $region47: #{encoder_forward.1} parent=1 // pred_check_branch
      %104 = sbr.rel (0) target = $region49
    $region48: #{encoder_forward.1} parent=1 // pred_region
      _
    $region49: #{encoder_forward.1} parent=1 // pred_fallthru
      _
    // Predicated region
    $region50: #{encoder_forward.1} parent=1 // pred_check
      _
    $region51: #{encoder_forward.1} parent=1 // pred_check_branch
      %106 = sbr.rel (0) target = $region53
    $region52: #{encoder_forward.1} parent=1 // pred_region
      %s108 = ssub.s32 16, 16
      %109 = vsyncadd [#allocation12], %s108
      %s111 = sshll.u32 [#allocation13], 4
      %s112 = int_to_ptr.vmem [resolvable:$true] %s111
      %114 = dma.hbm_to_vmem [thread:$0]  %s12, 16, %s112, [#allocation12]
    $region53: #{encoder_forward.1} parent=1 // pred_fallthru
      _
    // Predicated region
    $region54: #{encoder_forward.1} parent=1 // pred_check
      _
    $region55: #{encoder_forward.1} parent=1 // pred_check_branch
      %116 = sbr.rel (0) target = $region57
    $region56: #{encoder_forward.1} parent=1 // pred_region
      %117 = dma.done [#allocation3], 896
    $region57: #{encoder_forward.1} parent=1 // pred_fallthru
      _
    // Predicated region
    $region58: #{encoder_forward.1} parent=1 // pred_check
      _
    $region59: #{encoder_forward.1} parent=1 // pred_check_branch
      %119 = sbr.rel (0) target = $region61
    $region60: #{encoder_forward.1} parent=1 // pred_region
      %120 = dma.done [#allocation6], 1536
    $region61: #{encoder_forward.1} parent=1 // pred_fallthru
      _
    // Predicated region
    $region62: #{encoder_forward.1} parent=1 // pred_check
      _
    $region63: #{encoder_forward.1} parent=1 // pred_check_branch
      %122 = sbr.rel (0) target = $region65
    $region64: #{encoder_forward.1} parent=1 // pred_region
      %123 = dma.done [#allocation6], 1536
    $region65: #{encoder_forward.1} parent=1 // pred_fallthru
      _
    // Predicated region
    $region66: #{encoder_forward.1} parent=1 // pred_check
      _
    $region67: #{encoder_forward.1} parent=1 // pred_check_branch
      %125 = sbr.rel (0) target = $region69
    $region68: #{encoder_forward.1} parent=1 // pred_region
      %126 = dma.done [#allocation9], 768
    $region69: #{encoder_forward.1} parent=1 // pred_fallthru
      _
    // Predicated region
    $region70: #{encoder_forward.1} parent=1 // pred_check
      _
    $region71: #{encoder_forward.1} parent=1 // pred_check_branch
      %128 = sbr.rel (0) target = $region73
    $region72: #{encoder_forward.1} parent=1 // pred_region
      %129 = dma.done [#allocation9], 16
    $region73: #{encoder_forward.1} parent=1 // pred_fallthru
      _
    // Predicated region
    $region74: #{encoder_forward.1} parent=1 // pred_check
      _
    $region75: #{encoder_forward.1} parent=1 // pred_check_branch
      %131 = sbr.rel (0) target = $region77
    $region76: #{encoder_forward.1} parent=1 // pred_region
      %132 = dma.done [#allocation12], 96
    $region77: #{encoder_forward.1} parent=1 // pred_fallthru
      _
    // Predicated region
    $region78: #{encoder_forward.1} parent=1 // pred_check
      _
    $region79: #{encoder_forward.1} parent=1 // pred_check_branch
      %134 = sbr.rel (0) target = $region81
    $region80: #{encoder_forward.1} parent=1 // pred_region
      %135 = dma.done [#allocation12], 16
    $region81: #{encoder_forward.1} parent=1 // pred_fallthru
      _
    %v136 = vld [vmem:[#allocation2] sm:$0xff]
    %v137 = vld [vmem:[#allocation2 + $0x8] sm:$0xff]
    %v138 = vld [vmem:[#allocation2 + $0x10] sm:$0xff]
    %v139 = vld [vmem:[#allocation2 + $0x18] sm:$0xff]
    %v140 = vld [vmem:[#allocation2 + $0x20] sm:$0xff]
    %v141 = vld [vmem:[#allocation2 + $0x28] sm:$0xff]
    %v142 = vld [vmem:[#allocation2 + $0x30] sm:$0xff]
    %v143 = vld [vmem:[#allocation7] sm:$0xff]
    %v144 = vld [vmem:[#allocation7 + $0x8] sm:$0xff]
    %v145 = vld [vmem:[#allocation7 + $0x10] sm:$0xff]
    %v146 = vld [vmem:[#allocation7 + $0x18] sm:$0xf]
    %vm147 = vcmask 228352
    %v149 = vsel %vm147, %v136, 0
    %v152 = vsel %vm147, %v137, 0
    %v155 = vsel %vm147, %v138, 0
    %v158 = vsel %vm147, %v139, 0
    %v161 = vsel %vm147, %v140, 0
    %v164 = vsel %vm147, %v141, 0
    %v167 = vsel %vm147, %v142, 0
    %vm169 = vcmask 1043456
    %v171 = vsel %vm169, %v146, 0
    %173 = vmatprep.subr.mxu0 0.0
    %174 = vmatpush1.msra.mxu0 %v143
    %175 = vmatprep.subr.mxu0 0.0
    %176 = vmatpush1.msra.mxu0 %v144
    %177 = vmatprep.subr.mxu0 0.0
    %178 = vmatpush1.msra.mxu0 %v145
    %179 = vmatprep.subr.mxu0 0.0
    %180 = vmatpush1.msra.mxu0 %v171
    %181 = vmatprep.subr.mxu0 0.0
    %182 = vmatpush1.msra.mxu0 0.0
    %183 = vmatprep.subr.mxu0 0.0
    %184 = vmatpush1.msra.mxu0 0.0
    %185 = vmatprep.subr.mxu0 0.0
    %186 = vmatpush1.msra.mxu0 0.0
    %187 = vmatprep.subr.mxu0 0.0
    %188 = vmatpush1.msra.mxu0 0.0
    %189 = vmatprep.subr.mxu0 0.0
    %190 = vmatpush1.msra.mxu0 0.0
    %191 = vmatprep.subr.mxu0 0.0
    %192 = vmatpush1.msra.mxu0 0.0
    %193 = vmatprep.subr.mxu0 0.0
    %194 = vmatpush1.msra.mxu0 0.0
    %195 = vmatprep.subr.mxu0 0.0
    %196 = vmatpush1.msra.mxu0 0.0
    %197 = vmatprep.subr.mxu0 0.0
    %198 = vmatpush1.msra.mxu0 0.0
    %199 = vmatprep.subr.mxu0 0.0
    %200 = vmatpush1.msra.mxu0 0.0
    %201 = vmatprep.subr.mxu0 0.0
    %202 = vmatpush1.msra.mxu0 0.0
    %203 = vmatprep.subr.mxu0 0.0
    %204 = vmatpush1.msra.mxu0 0.0
    %205 = vmatprep.subr.mxu0 0.0
    %206 = vmatpush1.msra.mxu0 0.0
    %207 = vmatprep.subr.mxu0 0.0
    %208 = vmatpush1.msra.mxu0 0.0
    %209 = vmatprep.subr.mxu0 0.0
    %210 = vmatpush1.msra.mxu0 0.0
    %211 = vmatprep.subr.mxu0 0.0
    %212 = vmatpush1.msra.mxu0 0.0
    %213 = vmatprep.subr.mxu0 0.0
    %214 = vmatpush1.msra.mxu0 0.0
    %215 = vmatprep.subr.mxu0 0.0
    %216 = vmatpush1.msra.mxu0 0.0
    %217 = vmatprep.subr.mxu0 0.0
    %218 = vmatpush1.msra.mxu0 0.0
    %219 = vmatprep.subr.mxu0 0.0
    %220 = vmatpush1.msra.mxu0 0.0
    %221 = vmatprep.subr.mxu0 0.0
    %222 = vmatpush1.msra.mxu0 0.0
    %223 = vmatprep.subr.mxu0 0.0
    %224 = vmatpush1.msra.mxu0 0.0
    %225 = vmatprep.subr.mxu0 0.0
    %226 = vmatpush1.msra.mxu0 0.0
    %227 = vmatprep.subr.mxu0 0.0
    %228 = vmatpush1.msra.mxu0 0.0
    %229 = vmatprep.subr.mxu0 0.0
    %230 = vmatpush1.msra.mxu0 0.0
    %231 = vmatprep.subr.mxu0 0.0
    %232 = vmatpush1.msra.mxu0 0.0
    %233 = vmatprep.subr.mxu0 0.0
    %234 = vmatpush1.msra.mxu0 0.0
    %235 = vmatprep.subr.mxu0 0.0
    %236 = vmatpush1.msra.mxu0 0.0
    %237 = vmatprep.mubr.f32.mxu0 0.0
    %238 = vmatmul.mubr.f32.gmra.mrb[0].mxu0 %v149
    %v239 = vpop.f32.mrb[0].mxu0
    %v240 = vadd.f32 0.0, %v239
    %v241 = vpop.f32.mrb[0].mxu0
    %242 = vmatprep.mubr.f32.mxu0 0.0
    %243 = vmatmul.mubr.f32.gmra.mrb[0].mxu0 %v152
    %v244 = vpop.f32.mrb[0].mxu0
    %v245 = vadd.f32 0.0, %v244
    %v246 = vpop.f32.mrb[0].mxu0
    %247 = vmatprep.mubr.f32.mxu0 0.0
    %248 = vmatmul.mubr.f32.gmra.mrb[0].mxu0 %v155
    %v249 = vpop.f32.mrb[0].mxu0
    %v250 = vadd.f32 0.0, %v249
    %v251 = vpop.f32.mrb[0].mxu0
    %252 = vmatprep.mubr.f32.mxu0 0.0
    %253 = vmatmul.mubr.f32.gmra.mrb[0].mxu0 %v158
    %v254 = vpop.f32.mrb[0].mxu0
    %v255 = vadd.f32 0.0, %v254
    %v256 = vpop.f32.mrb[0].mxu0
    %257 = vmatprep.mubr.f32.mxu0 0.0
    %258 = vmatmul.mubr.f32.gmra.mrb[0].mxu0 %v161
    %v259 = vpop.f32.mrb[0].mxu0
    %v260 = vadd.f32 0.0, %v259
    %v261 = vpop.f32.mrb[0].mxu0
    %262 = vmatprep.mubr.f32.mxu0 0.0
    %263 = vmatmul.mubr.f32.gmra.mrb[0].mxu0 %v164
    %v264 = vpop.f32.mrb[0].mxu0
    %v265 = vadd.f32 0.0, %v264
    %v266 = vpop.f32.mrb[0].mxu0
    %267 = vmatprep.mubr.f32.mxu0 0.0
    %268 = vmatmul.mubr.f32.gmra.mrb[0].mxu0 %v167
    %v269 = vpop.f32.mrb[0].mxu0
    %v270 = vadd.f32 0.0, %v269
    %v271 = vpop.f32.mrb[0].mxu0
    %272 = vdwg.mxu0
    %v273 = vld [vmem:[#allocation5] sm:$0xff]
    %v274 = vld [vmem:[#allocation5 + $0x8] sm:$0xff]
    %v275 = vld [vmem:[#allocation5 + $0x10] sm:$0xff]
    %v276 = vld [vmem:[#allocation5 + $0x18] sm:$0xf]
    %s277 = scalar_lea.vmem [#allocation7], 32
    %v278 = vld [vmem:[%s277] sm:$0xff]
    %v279 = vld [vmem:[%s277 + $0x8] sm:$0xff]
    %v280 = vld [vmem:[%s277 + $0x10] sm:$0xff]
    %v281 = vld [vmem:[%s277 + $0x18] sm:$0xf]
    %v283 = vsel %vm169, %v281, 0
    %285 = vmatprep.subr.mxu0 0.0
    %286 = vmatpush1.msra.mxu0 %v278
    %287 = vmatprep.subr.mxu0 0.0
    %288 = vmatpush1.msra.mxu0 %v279
    %289 = vmatprep.subr.mxu0 0.0
    %290 = vmatpush1.msra.mxu0 %v280
    %291 = vmatprep.subr.mxu0 0.0
    %292 = vmatpush1.msra.mxu0 %v283
    %293 = vmatprep.subr.mxu0 0.0
    %294 = vmatpush1.msra.mxu0 0.0
    %295 = vmatprep.subr.mxu0 0.0
    %296 = vmatpush1.msra.mxu0 0.0
    %297 = vmatprep.subr.mxu0 0.0
    %298 = vmatpush1.msra.mxu0 0.0
    %299 = vmatprep.subr.mxu0 0.0
    %300 = vmatpush1.msra.mxu0 0.0
    %301 = vmatprep.subr.mxu0 0.0
    %302 = vmatpush1.msra.mxu0 0.0
    %303 = vmatprep.subr.mxu0 0.0
    %304 = vmatpush1.msra.mxu0 0.0
    %305 = vmatprep.subr.mxu0 0.0
    %306 = vmatpush1.msra.mxu0 0.0
    %307 = vmatprep.subr.mxu0 0.0
    %308 = vmatpush1.msra.mxu0 0.0
    %309 = vmatprep.subr.mxu0 0.0
    %310 = vmatpush1.msra.mxu0 0.0
    %311 = vmatprep.subr.mxu0 0.0
    %312 = vmatpush1.msra.mxu0 0.0
    %313 = vmatprep.subr.mxu0 0.0
    %314 = vmatpush1.msra.mxu0 0.0
    %315 = vmatprep.subr.mxu0 0.0
    %316 = vmatpush1.msra.mxu0 0.0
    %317 = vmatprep.subr.mxu0 0.0
    %318 = vmatpush1.msra.mxu0 0.0
    %319 = vmatprep.subr.mxu0 0.0
    %320 = vmatpush1.msra.mxu0 0.0
    %321 = vmatprep.subr.mxu0 0.0
    %322 = vmatpush1.msra.mxu0 0.0
    %323 = vmatprep.subr.mxu0 0.0
    %324 = vmatpush1.msra.mxu0 0.0
    %325 = vmatprep.subr.mxu0 0.0
    %326 = vmatpush1.msra.mxu0 0.0
    %327 = vmatprep.subr.mxu0 0.0
    %328 = vmatpush1.msra.mxu0 0.0
    %329 = vmatprep.subr.mxu0 0.0
    %330 = vmatpush1.msra.mxu0 0.0
    %331 = vmatprep.subr.mxu0 0.0
    %332 = vmatpush1.msra.mxu0 0.0
    %333 = vmatprep.subr.mxu0 0.0
    %334 = vmatpush1.msra.mxu0 0.0
    %335 = vmatprep.subr.mxu0 0.0
    %336 = vmatpush1.msra.mxu0 0.0
    %337 = vmatprep.subr.mxu0 0.0
    %338 = vmatpush1.msra.mxu0 0.0
    %339 = vmatprep.subr.mxu0 0.0
    %340 = vmatpush1.msra.mxu0 0.0
    %341 = vmatprep.subr.mxu0 0.0
    %342 = vmatpush1.msra.mxu0 0.0
    %343 = vmatprep.subr.mxu0 0.0
    %344 = vmatpush1.msra.mxu0 0.0
    %345 = vmatprep.subr.mxu0 0.0
    %346 = vmatpush1.msra.mxu0 0.0
    %347 = vmatprep.subr.mxu0 0.0
    %348 = vmatpush1.msra.mxu0 0.0
    %349 = vmatprep.mubr.f32.mxu0 0.0
    %350 = vmatmul.mubr.f32.gmra.mrb[0].mxu0 %v149
    %v351 = vpop.f32.mrb[0].mxu0
    %v352 = vadd.f32 0.0, %v351
    %v353 = vpop.f32.mrb[0].mxu0
    %354 = vmatprep.mubr.f32.mxu0 0.0
    %355 = vmatmul.mubr.f32.gmra.mrb[0].mxu0 %v152
    %v356 = vpop.f32.mrb[0].mxu0
    %v357 = vadd.f32 0.0, %v356
    %v358 = vpop.f32.mrb[0].mxu0
    %359 = vmatprep.mubr.f32.mxu0 0.0
    %360 = vmatmul.mubr.f32.gmra.mrb[0].mxu0 %v155
    %v361 = vpop.f32.mrb[0].mxu0
    %v362 = vadd.f32 0.0, %v361
    %v363 = vpop.f32.mrb[0].mxu0
    %364 = vmatprep.mubr.f32.mxu0 0.0
    %365 = vmatmul.mubr.f32.gmra.mrb[0].mxu0 %v158
    %v366 = vpop.f32.mrb[0].mxu0
    %v367 = vadd.f32 0.0, %v366
    %v368 = vpop.f32.mrb[0].mxu0
    %369 = vmatprep.mubr.f32.mxu0 0.0
    %370 = vmatmul.mubr.f32.gmra.mrb[0].mxu0 %v161
    %v371 = vpop.f32.mrb[0].mxu0
    %v372 = vadd.f32 0.0, %v371
    %v373 = vpop.f32.mrb[0].mxu0
    %374 = vmatprep.mubr.f32.mxu0 0.0
    %375 = vmatmul.mubr.f32.gmra.mrb[0].mxu0 %v164
    %v376 = vpop.f32.mrb[0].mxu0
    %v377 = vadd.f32 0.0, %v376
    %v378 = vpop.f32.mrb[0].mxu0
    %379 = vmatprep.mubr.f32.mxu0 0.0
    %380 = vmatmul.mubr.f32.gmra.mrb[0].mxu0 %v167
    %v381 = vpop.f32.mrb[0].mxu0
    %v382 = vadd.f32 0.0, %v381
    %v383 = vpop.f32.mrb[0].mxu0
    %384 = vdwg.mxu0
    %s385 = scalar_lea.vmem [#allocation5], 32
    %v386 = vld [vmem:[%s385] sm:$0xff]
    %v387 = vld [vmem:[%s385 + $0x8] sm:$0xff]
    %v388 = vld [vmem:[%s385 + $0x10] sm:$0xff]
    %v389 = vld [vmem:[%s385 + $0x18] sm:$0xf]
    %vm390 = vcmask 457728
    %v392 = vsel %vm390, %v386, 0
    %v395 = vsel %vm390, %v387, 0
    %v398 = vsel %vm390, %v388, 0
    %v401 = vsel %vm390, %v389, 0
    %403 = vmatprep.subr.mxu0 0.0
    %404 = vmatpush1.msra.mxu0 %v352
    %405 = vmatprep.subr.mxu0 0.0
    %406 = vmatpush1.msra.mxu0 %v357
    %407 = vmatprep.subr.mxu0 0.0
    %408 = vmatpush1.msra.mxu0 %v362
    %409 = vmatprep.subr.mxu0 0.0
    %410 = vmatpush1.msra.mxu0 %v367
    %411 = vmatprep.subr.mxu0 0.0
    %412 = vmatpush1.msra.mxu0 %v372
    %413 = vmatprep.subr.mxu0 0.0
    %414 = vmatpush1.msra.mxu0 %v377
    %415 = vmatprep.subr.mxu0 0.0
    %416 = vmatpush1.msra.mxu0 %v382
    %417 = vmatprep.subr.mxu0 0.0
    %418 = vmatpush1.msra.mxu0 0.0
    %419 = vmatprep.subr.mxu0 0.0
    %420 = vmatpush1.msra.mxu0 0.0
    %421 = vmatprep.subr.mxu0 0.0
    %422 = vmatpush1.msra.mxu0 0.0
    %423 = vmatprep.subr.mxu0 0.0
    %424 = vmatpush1.msra.mxu0 0.0
    %425 = vmatprep.subr.mxu0 0.0
    %426 = vmatpush1.msra.mxu0 0.0
    %427 = vmatprep.subr.mxu0 0.0
    %428 = vmatpush1.msra.mxu0 0.0
    %429 = vmatprep.subr.mxu0 0.0
    %430 = vmatpush1.msra.mxu0 0.0
    %431 = vmatprep.subr.mxu0 0.0
    %432 = vmatpush1.msra.mxu0 0.0
    %433 = vmatprep.subr.mxu0 0.0
    %434 = vmatpush1.msra.mxu0 0.0
    %435 = vmatprep.subr.mxu0 0.0
    %436 = vmatpush1.msra.mxu0 0.0
    %437 = vmatprep.subr.mxu0 0.0
    %438 = vmatpush1.msra.mxu0 0.0
    %439 = vmatprep.subr.mxu0 0.0
    %440 = vmatpush1.msra.mxu0 0.0
    %441 = vmatprep.subr.mxu0 0.0
    %442 = vmatpush1.msra.mxu0 0.0
    %443 = vmatprep.subr.mxu0 0.0
    %444 = vmatpush1.msra.mxu0 0.0
    %445 = vmatprep.subr.mxu0 0.0
    %446 = vmatpush1.msra.mxu0 0.0
    %447 = vmatprep.subr.mxu0 0.0
    %448 = vmatpush1.msra.mxu0 0.0
    %449 = vmatprep.subr.mxu0 0.0
    %450 = vmatpush1.msra.mxu0 0.0
    %451 = vmatprep.subr.mxu0 0.0
    %452 = vmatpush1.msra.mxu0 0.0
    %453 = vmatprep.subr.mxu0 0.0
    %454 = vmatpush1.msra.mxu0 0.0
    %455 = vmatprep.subr.mxu0 0.0
    %456 = vmatpush1.msra.mxu0 0.0
    %457 = vmatprep.subr.mxu0 0.0
    %458 = vmatpush1.msra.mxu0 0.0
    %459 = vmatprep.subr.mxu0 0.0
    %460 = vmatpush1.msra.mxu0 0.0
    %461 = vmatprep.subr.mxu0 0.0
    %462 = vmatpush1.msra.mxu0 0.0
    %463 = vmatprep.subr.mxu0 0.0
    %464 = vmatpush1.msra.mxu0 0.0
    %465 = vmatprep.subr.mxu0 0.0
    %466 = vmatpush1.msra.mxu0 0.0
    %467 = vmatprep.mubr.f32.mxu0 0.0
    %468 = vmatmul.mubr.f32.gmra.mrb[0].mxu0 %v392
    %v469 = vpop.f32.mrb[0].mxu0
    %v470 = vadd.f32 0.0, %v469
    %v471 = vpop.f32.mrb[0].mxu0
    %472 = vmatprep.mubr.f32.mxu0 0.0
    %473 = vmatmul.mubr.f32.gmra.mrb[0].mxu0 %v395
    %v474 = vpop.f32.mrb[0].mxu0
    %v475 = vadd.f32 0.0, %v474
    %v476 = vpop.f32.mrb[0].mxu0
    %477 = vmatprep.mubr.f32.mxu0 0.0
    %478 = vmatmul.mubr.f32.gmra.mrb[0].mxu0 %v398
    %v479 = vpop.f32.mrb[0].mxu0
    %v480 = vadd.f32 0.0, %v479
    %v481 = vpop.f32.mrb[0].mxu0
    %482 = vmatprep.mubr.f32.mxu0 0.0
    %483 = vmatmul.mubr.f32.gmra.mrb[0].mxu0 %v401
    %v484 = vpop.f32.mrb[0].mxu0
    %v485 = vadd.f32 0.0, %v484
    %v486 = vpop.f32.mrb[0].mxu0
    %487 = vdwg.mxu0
    %v489 = vsel %vm390, %v273, 0
    %v492 = vsel %vm390, %v274, 0
    %v495 = vsel %vm390, %v275, 0
    %v498 = vsel %vm390, %v276, 0
    %500 = vmatprep.subr.mxu0 0.0
    %501 = vmatpush1.msra.mxu0 %v240
    %502 = vmatprep.subr.mxu0 0.0
    %503 = vmatpush1.msra.mxu0 %v245
    %504 = vmatprep.subr.mxu0 0.0
    %505 = vmatpush1.msra.mxu0 %v250
    %506 = vmatprep.subr.mxu0 0.0
    %507 = vmatpush1.msra.mxu0 %v255
    %508 = vmatprep.subr.mxu0 0.0
    %509 = vmatpush1.msra.mxu0 %v260
    %510 = vmatprep.subr.mxu0 0.0
    %511 = vmatpush1.msra.mxu0 %v265
    %512 = vmatprep.subr.mxu0 0.0
    %513 = vmatpush1.msra.mxu0 %v270
    %514 = vmatprep.subr.mxu0 0.0
    %515 = vmatpush1.msra.mxu0 0.0
    %516 = vmatprep.subr.mxu0 0.0
    %517 = vmatpush1.msra.mxu0 0.0
    %518 = vmatprep.subr.mxu0 0.0
    %519 = vmatpush1.msra.mxu0 0.0
    %520 = vmatprep.subr.mxu0 0.0
    %521 = vmatpush1.msra.mxu0 0.0
    %522 = vmatprep.subr.mxu0 0.0
    %523 = vmatpush1.msra.mxu0 0.0
    %524 = vmatprep.subr.mxu0 0.0
    %525 = vmatpush1.msra.mxu0 0.0
    %526 = vmatprep.subr.mxu0 0.0
    %527 = vmatpush1.msra.mxu0 0.0
    %528 = vmatprep.subr.mxu0 0.0
    %529 = vmatpush1.msra.mxu0 0.0
    %530 = vmatprep.subr.mxu0 0.0
    %531 = vmatpush1.msra.mxu0 0.0
    %532 = vmatprep.subr.mxu0 0.0
    %533 = vmatpush1.msra.mxu0 0.0
    %534 = vmatprep.subr.mxu0 0.0
    %535 = vmatpush1.msra.mxu0 0.0
    %536 = vmatprep.subr.mxu0 0.0
    %537 = vmatpush1.msra.mxu0 0.0
    %538 = vmatprep.subr.mxu0 0.0
    %539 = vmatpush1.msra.mxu0 0.0
    %540 = vmatprep.subr.mxu0 0.0
    %541 = vmatpush1.msra.mxu0 0.0
    %542 = vmatprep.subr.mxu0 0.0
    %543 = vmatpush1.msra.mxu0 0.0
    %544 = vmatprep.subr.mxu0 0.0
    %545 = vmatpush1.msra.mxu0 0.0
    %546 = vmatprep.subr.mxu0 0.0
    %547 = vmatpush1.msra.mxu0 0.0
    %548 = vmatprep.subr.mxu0 0.0
    %549 = vmatpush1.msra.mxu0 0.0
    %550 = vmatprep.subr.mxu0 0.0
    %551 = vmatpush1.msra.mxu0 0.0
    %552 = vmatprep.subr.mxu0 0.0
    %553 = vmatpush1.msra.mxu0 0.0
    %554 = vmatprep.subr.mxu0 0.0
    %555 = vmatpush1.msra.mxu0 0.0
    %556 = vmatprep.subr.mxu0 0.0
    %557 = vmatpush1.msra.mxu0 0.0
    %558 = vmatprep.subr.mxu0 0.0
    %559 = vmatpush1.msra.mxu0 0.0
    %560 = vmatprep.subr.mxu0 0.0
    %561 = vmatpush1.msra.mxu0 0.0
    %562 = vmatprep.subr.mxu0 0.0
    %563 = vmatpush1.msra.mxu0 0.0
    %564 = vmatprep.mubr.f32.mxu0 0.0
    %565 = vmatmul.mubr.f32.gmra.mrb[0].mxu0 %v489
    %v566 = vpop.f32.mrb[0].mxu0
    %v567 = vadd.f32 %v470, %v566
    %v568 = vpop.f32.mrb[0].mxu0
    %569 = vmatprep.mubr.f32.mxu0 0.0
    %570 = vmatmul.mubr.f32.gmra.mrb[0].mxu0 %v492
    %v571 = vpop.f32.mrb[0].mxu0
    %v572 = vadd.f32 %v475, %v571
    %v573 = vpop.f32.mrb[0].mxu0
    %574 = vmatprep.mubr.f32.mxu0 0.0
    %575 = vmatmul.mubr.f32.gmra.mrb[0].mxu0 %v495
    %v576 = vpop.f32.mrb[0].mxu0
    %v577 = vadd.f32 %v480, %v576
    %v578 = vpop.f32.mrb[0].mxu0
    %579 = vmatprep.mubr.f32.mxu0 0.0
    %580 = vmatmul.mubr.f32.gmra.mrb[0].mxu0 %v498
    %v581 = vpop.f32.mrb[0].mxu0
    %v582 = vadd.f32 %v485, %v581
    %v583 = vpop.f32.mrb[0].mxu0
    %584 = vdwg.mxu0
    %s585 = scalar_lea.vmem [#allocation7], 64
    %v586 = vld [vmem:[%s585] sm:$0xff]
    %v587 = vld [vmem:[%s585 + $0x8] sm:$0xff]
    %v588 = vld [vmem:[%s585 + $0x10] sm:$0xff]
    %v589 = vld [vmem:[%s585 + $0x18] sm:$0xf]
    %v591 = vsel %vm169, %v589, 0
    %593 = vmatprep.subr.mxu0 0.0
    %594 = vmatpush1.msra.mxu0 %v586
    %595 = vmatprep.subr.mxu0 0.0
    %596 = vmatpush1.msra.mxu0 %v587
    %597 = vmatprep.subr.mxu0 0.0
    %598 = vmatpush1.msra.mxu0 %v588
    %599 = vmatprep.subr.mxu0 0.0
    %600 = vmatpush1.msra.mxu0 %v591
    %601 = vmatprep.subr.mxu0 0.0
    %602 = vmatpush1.msra.mxu0 0.0
    %603 = vmatprep.subr.mxu0 0.0
    %604 = vmatpush1.msra.mxu0 0.0
    %605 = vmatprep.subr.mxu0 0.0
    %606 = vmatpush1.msra.mxu0 0.0
    %607 = vmatprep.subr.mxu0 0.0
    %608 = vmatpush1.msra.mxu0 0.0
    %609 = vmatprep.subr.mxu0 0.0
    %610 = vmatpush1.msra.mxu0 0.0
    %611 = vmatprep.subr.mxu0 0.0
    %612 = vmatpush1.msra.mxu0 0.0
    %613 = vmatprep.subr.mxu0 0.0
    %614 = vmatpush1.msra.mxu0 0.0
    %615 = vmatprep.subr.mxu0 0.0
    %616 = vmatpush1.msra.mxu0 0.0
    %617 = vmatprep.subr.mxu0 0.0
    %618 = vmatpush1.msra.mxu0 0.0
    %619 = vmatprep.subr.mxu0 0.0
    %620 = vmatpush1.msra.mxu0 0.0
    %621 = vmatprep.subr.mxu0 0.0
    %622 = vmatpush1.msra.mxu0 0.0
    %623 = vmatprep.subr.mxu0 0.0
    %624 = vmatpush1.msra.mxu0 0.0
    %625 = vmatprep.subr.mxu0 0.0
    %626 = vmatpush1.msra.mxu0 0.0
    %627 = vmatprep.subr.mxu0 0.0
    %628 = vmatpush1.msra.mxu0 0.0
    %629 = vmatprep.subr.mxu0 0.0
    %630 = vmatpush1.msra.mxu0 0.0
    %631 = vmatprep.subr.mxu0 0.0
    %632 = vmatpush1.msra.mxu0 0.0
    %633 = vmatprep.subr.mxu0 0.0
    %634 = vmatpush1.msra.mxu0 0.0
    %635 = vmatprep.subr.mxu0 0.0
    %636 = vmatpush1.msra.mxu0 0.0
    %637 = vmatprep.subr.mxu0 0.0
    %638 = vmatpush1.msra.mxu0 0.0
    %639 = vmatprep.subr.mxu0 0.0
    %640 = vmatpush1.msra.mxu0 0.0
    %641 = vmatprep.subr.mxu0 0.0
    %642 = vmatpush1.msra.mxu0 0.0
    %643 = vmatprep.subr.mxu0 0.0
    %644 = vmatpush1.msra.mxu0 0.0
    %645 = vmatprep.subr.mxu0 0.0
    %646 = vmatpush1.msra.mxu0 0.0
    %647 = vmatprep.subr.mxu0 0.0
    %648 = vmatpush1.msra.mxu0 0.0
    %649 = vmatprep.subr.mxu0 0.0
    %650 = vmatpush1.msra.mxu0 0.0
    %651 = vmatprep.subr.mxu0 0.0
    %652 = vmatpush1.msra.mxu0 0.0
    %653 = vmatprep.subr.mxu0 0.0
    %654 = vmatpush1.msra.mxu0 0.0
    %655 = vmatprep.subr.mxu0 0.0
    %656 = vmatpush1.msra.mxu0 0.0
    %657 = vmatprep.mubr.f32.mxu0 0.0
    %658 = vmatmul.mubr.f32.gmra.mrb[0].mxu0 %v149
    %v659 = vpop.f32.mrb[0].mxu0
    %v660 = vadd.f32 0.0, %v659
    %v661 = vpop.f32.mrb[0].mxu0
    %662 = vmatprep.mubr.f32.mxu0 0.0
    %663 = vmatmul.mubr.f32.gmra.mrb[0].mxu0 %v152
    %v664 = vpop.f32.mrb[0].mxu0
    %v665 = vadd.f32 0.0, %v664
    %v666 = vpop.f32.mrb[0].mxu0
    %667 = vmatprep.mubr.f32.mxu0 0.0
    %668 = vmatmul.mubr.f32.gmra.mrb[0].mxu0 %v155
    %v669 = vpop.f32.mrb[0].mxu0
    %v670 = vadd.f32 0.0, %v669
    %v671 = vpop.f32.mrb[0].mxu0
    %672 = vmatprep.mubr.f32.mxu0 0.0
    %673 = vmatmul.mubr.f32.gmra.mrb[0].mxu0 %v158
    %v674 = vpop.f32.mrb[0].mxu0
    %v675 = vadd.f32 0.0, %v674
    %v676 = vpop.f32.mrb[0].mxu0
    %677 = vmatprep.mubr.f32.mxu0 0.0
    %678 = vmatmul.mubr.f32.gmra.mrb[0].mxu0 %v161
    %v679 = vpop.f32.mrb[0].mxu0
    %v680 = vadd.f32 0.0, %v679
    %v681 = vpop.f32.mrb[0].mxu0
    %682 = vmatprep.mubr.f32.mxu0 0.0
    %683 = vmatmul.mubr.f32.gmra.mrb[0].mxu0 %v164
    %v684 = vpop.f32.mrb[0].mxu0
    %v685 = vadd.f32 0.0, %v684
    %v686 = vpop.f32.mrb[0].mxu0
    %687 = vmatprep.mubr.f32.mxu0 0.0
    %688 = vmatmul.mubr.f32.gmra.mrb[0].mxu0 %v167
    %v689 = vpop.f32.mrb[0].mxu0
    %v690 = vadd.f32 0.0, %v689
    %v691 = vpop.f32.mrb[0].mxu0
    %692 = vdwg.mxu0
    %s693 = scalar_lea.vmem [#allocation5], 64
    %v694 = vld [vmem:[%s693] sm:$0xff]
    %v695 = vld [vmem:[%s693 + $0x8] sm:$0xff]
    %v696 = vld [vmem:[%s693 + $0x10] sm:$0xff]
    %v697 = vld [vmem:[%s693 + $0x18] sm:$0xf]
    %v699 = vsel %vm390, %v694, 0
    %v702 = vsel %vm390, %v695, 0
    %v705 = vsel %vm390, %v696, 0
    %v708 = vsel %vm390, %v697, 0
    %710 = vmatprep.subr.mxu0 0.0
    %711 = vmatpush1.msra.mxu0 %v660
    %712 = vmatprep.subr.mxu0 0.0
    %713 = vmatpush1.msra.mxu0 %v665
    %714 = vmatprep.subr.mxu0 0.0
    %715 = vmatpush1.msra.mxu0 %v670
    %716 = vmatprep.subr.mxu0 0.0
    %717 = vmatpush1.msra.mxu0 %v675
    %718 = vmatprep.subr.mxu0 0.0
    %719 = vmatpush1.msra.mxu0 %v680
    %720 = vmatprep.subr.mxu0 0.0
    %721 = vmatpush1.msra.mxu0 %v685
    %722 = vmatprep.subr.mxu0 0.0
    %723 = vmatpush1.msra.mxu0 %v690
    %724 = vmatprep.subr.mxu0 0.0
    %725 = vmatpush1.msra.mxu0 0.0
    %726 = vmatprep.subr.mxu0 0.0
    %727 = vmatpush1.msra.mxu0 0.0
    %728 = vmatprep.subr.mxu0 0.0
    %729 = vmatpush1.msra.mxu0 0.0
    %730 = vmatprep.subr.mxu0 0.0
    %731 = vmatpush1.msra.mxu0 0.0
    %732 = vmatprep.subr.mxu0 0.0
    %733 = vmatpush1.msra.mxu0 0.0
    %734 = vmatprep.subr.mxu0 0.0
    %735 = vmatpush1.msra.mxu0 0.0
    %736 = vmatprep.subr.mxu0 0.0
    %737 = vmatpush1.msra.mxu0 0.0
    %738 = vmatprep.subr.mxu0 0.0
    %739 = vmatpush1.msra.mxu0 0.0
    %740 = vmatprep.subr.mxu0 0.0
    %741 = vmatpush1.msra.mxu0 0.0
    %742 = vmatprep.subr.mxu0 0.0
    %743 = vmatpush1.msra.mxu0 0.0
    %744 = vmatprep.subr.mxu0 0.0
    %745 = vmatpush1.msra.mxu0 0.0
    %746 = vmatprep.subr.mxu0 0.0
    %747 = vmatpush1.msra.mxu0 0.0
    %748 = vmatprep.subr.mxu0 0.0
    %749 = vmatpush1.msra.mxu0 0.0
    %750 = vmatprep.subr.mxu0 0.0
    %751 = vmatpush1.msra.mxu0 0.0
    %752 = vmatprep.subr.mxu0 0.0
    %753 = vmatpush1.msra.mxu0 0.0
    %754 = vmatprep.subr.mxu0 0.0
    %755 = vmatpush1.msra.mxu0 0.0
    %756 = vmatprep.subr.mxu0 0.0
    %757 = vmatpush1.msra.mxu0 0.0
    %758 = vmatprep.subr.mxu0 0.0
    %759 = vmatpush1.msra.mxu0 0.0
    %760 = vmatprep.subr.mxu0 0.0
    %761 = vmatpush1.msra.mxu0 0.0
    %762 = vmatprep.subr.mxu0 0.0
    %763 = vmatpush1.msra.mxu0 0.0
    %764 = vmatprep.subr.mxu0 0.0
    %765 = vmatpush1.msra.mxu0 0.0
    %766 = vmatprep.subr.mxu0 0.0
    %767 = vmatpush1.msra.mxu0 0.0
    %768 = vmatprep.subr.mxu0 0.0
    %769 = vmatpush1.msra.mxu0 0.0
    %770 = vmatprep.subr.mxu0 0.0
    %771 = vmatpush1.msra.mxu0 0.0
    %772 = vmatprep.subr.mxu0 0.0
    %773 = vmatpush1.msra.mxu0 0.0
    %774 = vmatprep.mubr.f32.mxu0 0.0
    %775 = vmatmul.mubr.f32.gmra.mrb[0].mxu0 %v699
    %v776 = vpop.f32.mrb[0].mxu0
    %v777 = vadd.f32 0.0, %v776
    %v778 = vpop.f32.mrb[0].mxu0
    %779 = vmatprep.mubr.f32.mxu0 0.0
    %780 = vmatmul.mubr.f32.gmra.mrb[0].mxu0 %v702
    %v781 = vpop.f32.mrb[0].mxu0
    %v782 = vadd.f32 0.0, %v781
    %v783 = vpop.f32.mrb[0].mxu0
    %784 = vmatprep.mubr.f32.mxu0 0.0
    %785 = vmatmul.mubr.f32.gmra.mrb[0].mxu0 %v705
    %v786 = vpop.f32.mrb[0].mxu0
    %v787 = vadd.f32 0.0, %v786
    %v788 = vpop.f32.mrb[0].mxu0
    %789 = vmatprep.mubr.f32.mxu0 0.0
    %790 = vmatmul.mubr.f32.gmra.mrb[0].mxu0 %v708
    %v791 = vpop.f32.mrb[0].mxu0
    %v792 = vadd.f32 0.0, %v791
    %v793 = vpop.f32.mrb[0].mxu0
    %794 = vdwg.mxu0
    %v795 = vadd.f32 %v567, %v777
    %v796 = vadd.f32 %v572, %v782
    %v797 = vadd.f32 %v577, %v787
    %v798 = vadd.f32 %v582, %v792
    %v799 = vld [vmem:[%s3] sm:$0x1]
    %v801 = vlaneseq
    %v802 = vshrl.u32 %v801, 7
    %v803 = vsub.s32 0, %v802
    %v804 = vrot.slane %v799, %v803
    %v806 = vadd.f32 %v795, %v804
    %v807 = vadd.f32 %v796, %v804
    %v808 = vadd.f32 %v797, %v804
    %v809 = vadd.f32 %v798, %v804
    %v810 = vmax.f32 %v806, 0.0
    %v811 = vmax.f32 %v807, 0.0
    %v812 = vmax.f32 %v808, 0.0
    %v813 = vmax.f32 %v809, 0.0
    %v814 = vld [vmem:[%s5] sm:$0xff]
    %v815 = vld [vmem:[%s5 + $0x8] sm:$0xff]
    %v816 = vld [vmem:[%s5 + $0x10] sm:$0xff]
    %v817 = vld [vmem:[%s5 + $0x18] sm:$0xff]
    %v818 = vld [vmem:[%s5 + $0x20] sm:$0xff]
    %v819 = vld [vmem:[%s5 + $0x28] sm:$0xff]
    %v820 = vld [vmem:[%s5 + $0x30] sm:$0xff]
    %v821 = vld [vmem:[%s5 + $0x38] sm:$0xff]
    %v822 = vld [vmem:[%s5 + $0x40] sm:$0xff]
    %v823 = vld [vmem:[%s5 + $0x48] sm:$0xff]
    %v824 = vld [vmem:[%s5 + $0x50] sm:$0xff]
    %v825 = vld [vmem:[%s5 + $0x58] sm:$0xff]
    %v826 = vld [vmem:[%s5 + $0x60] sm:$0xff]
    %v827 = vld [vmem:[%s5 + $0x68] sm:$0xff]
    %vm828 = vcmask 916480
    %v830 = vsel %vm828, %v810, 0
    %v833 = vsel %vm828, %v811, 0
    %v836 = vsel %vm828, %v812, 0
    %v839 = vsel %vm828, %v813, 0
    %841 = vmatprep.subr.mxu0 0.0
    %842 = vmatpush1.msra.mxu0 %v814
    %843 = vmatprep.subr.mxu0 0.0
    %844 = vmatpush1.msra.mxu0 %v815
    %845 = vmatprep.subr.mxu0 0.0
    %846 = vmatpush1.msra.mxu0 %v816
    %847 = vmatprep.subr.mxu0 0.0
    %848 = vmatpush1.msra.mxu0 %v817
    %849 = vmatprep.subr.mxu0 0.0
    %850 = vmatpush1.msra.mxu0 %v818
    %851 = vmatprep.subr.mxu0 0.0
    %852 = vmatpush1.msra.mxu0 %v819
    %853 = vmatprep.subr.mxu0 0.0
    %854 = vmatpush1.msra.mxu0 %v820
    %855 = vmatprep.subr.mxu0 0.0
    %856 = vmatpush1.msra.mxu0 %v821
    %857 = vmatprep.subr.mxu0 0.0
    %858 = vmatpush1.msra.mxu0 %v822
    %859 = vmatprep.subr.mxu0 0.0
    %860 = vmatpush1.msra.mxu0 %v823
    %861 = vmatprep.subr.mxu0 0.0
    %862 = vmatpush1.msra.mxu0 %v824
    %863 = vmatprep.subr.mxu0 0.0
    %864 = vmatpush1.msra.mxu0 %v825
    %865 = vmatprep.subr.mxu0 0.0
    %866 = vmatpush1.msra.mxu0 %v826
    %867 = vmatprep.subr.mxu0 0.0
    %868 = vmatpush1.msra.mxu0 %v827
    %869 = vmatprep.subr.mxu0 0.0
    %870 = vmatpush1.msra.mxu0 0.0
    %871 = vmatprep.subr.mxu0 0.0
    %872 = vmatpush1.msra.mxu0 0.0
    %873 = vmatprep.subr.mxu0 0.0
    %874 = vmatpush1.msra.mxu0 0.0
    %875 = vmatprep.subr.mxu0 0.0
    %876 = vmatpush1.msra.mxu0 0.0
    %877 = vmatprep.subr.mxu0 0.0
    %878 = vmatpush1.msra.mxu0 0.0
    %879 = vmatprep.subr.mxu0 0.0
    %880 = vmatpush1.msra.mxu0 0.0
    %881 = vmatprep.subr.mxu0 0.0
    %882 = vmatpush1.msra.mxu0 0.0
    %883 = vmatprep.subr.mxu0 0.0
    %884 = vmatpush1.msra.mxu0 0.0
    %885 = vmatprep.subr.mxu0 0.0
    %886 = vmatpush1.msra.mxu0 0.0
    %887 = vmatprep.subr.mxu0 0.0
    %888 = vmatpush1.msra.mxu0 0.0
    %889 = vmatprep.subr.mxu0 0.0
    %890 = vmatpush1.msra.mxu0 0.0
    %891 = vmatprep.subr.mxu0 0.0
    %892 = vmatpush1.msra.mxu0 0.0
    %893 = vmatprep.subr.mxu0 0.0
    %894 = vmatpush1.msra.mxu0 0.0
    %895 = vmatprep.subr.mxu0 0.0
    %896 = vmatpush1.msra.mxu0 0.0
    %897 = vmatprep.subr.mxu0 0.0
    %898 = vmatpush1.msra.mxu0 0.0
    %899 = vmatprep.subr.mxu0 0.0
    %900 = vmatpush1.msra.mxu0 0.0
    %901 = vmatprep.subr.mxu0 0.0
    %902 = vmatpush1.msra.mxu0 0.0
    %903 = vmatprep.subr.mxu0 0.0
    %904 = vmatpush1.msra.mxu0 0.0
    %905 = vmatprep.mubr.f32.mxu0 0.0
    %906 = vmatmul.mubr.f32.gmra.mrb[0].mxu0 %v830
    %v907 = vpop.f32.mrb[0].mxu0
    %v908 = vadd.f32 0.0, %v907
    %v909 = vpop.f32.mrb[0].mxu0
    %910 = vmatprep.mubr.f32.mxu0 0.0
    %911 = vmatmul.mubr.f32.gmra.mrb[0].mxu0 %v833
    %v912 = vpop.f32.mrb[0].mxu0
    %v913 = vadd.f32 0.0, %v912
    %v914 = vpop.f32.mrb[0].mxu0
    %915 = vmatprep.mubr.f32.mxu0 0.0
    %916 = vmatmul.mubr.f32.gmra.mrb[0].mxu0 %v836
    %v917 = vpop.f32.mrb[0].mxu0
    %v918 = vadd.f32 0.0, %v917
    %v919 = vpop.f32.mrb[0].mxu0
    %920 = vmatprep.mubr.f32.mxu0 0.0
    %921 = vmatmul.mubr.f32.gmra.mrb[0].mxu0 %v839
    %v922 = vpop.f32.mrb[0].mxu0
    %v923 = vadd.f32 0.0, %v922
    %v924 = vpop.f32.mrb[0].mxu0
    %925 = vdwg.mxu0
    %v926 = vld [vmem:[#allocation8] sm:$0xff]
    %v927 = vld [vmem:[#allocation8 + $0x8] sm:$0x3f]
    %s928 = scalar_lea.vmem %s5, 112
    %v929 = vld [vmem:[%s928] sm:$0xff]
    %v930 = vld [vmem:[%s928 + $0x8] sm:$0xff]
    %v931 = vld [vmem:[%s928 + $0x10] sm:$0xff]
    %v932 = vld [vmem:[%s928 + $0x18] sm:$0xff]
    %v933 = vld [vmem:[%s928 + $0x20] sm:$0xff]
    %v934 = vld [vmem:[%s928 + $0x28] sm:$0xff]
    %v935 = vld [vmem:[%s928 + $0x30] sm:$0xff]
    %v936 = vld [vmem:[%s928 + $0x38] sm:$0xff]
    %v937 = vld [vmem:[%s928 + $0x40] sm:$0xff]
    %v938 = vld [vmem:[%s928 + $0x48] sm:$0xff]
    %v939 = vld [vmem:[%s928 + $0x50] sm:$0xff]
    %v940 = vld [vmem:[%s928 + $0x58] sm:$0xff]
    %v941 = vld [vmem:[%s928 + $0x60] sm:$0xff]
    %v942 = vld [vmem:[%s928 + $0x68] sm:$0xff]
    %943 = vmatprep.subr.mxu0 0.0
    %944 = vmatpush1.msra.mxu0 %v929
    %945 = vmatprep.subr.mxu0 0.0
    %946 = vmatpush1.msra.mxu0 %v930
    %947 = vmatprep.subr.mxu0 0.0
    %948 = vmatpush1.msra.mxu0 %v931
    %949 = vmatprep.subr.mxu0 0.0
    %950 = vmatpush1.msra.mxu0 %v932
    %951 = vmatprep.subr.mxu0 0.0
    %952 = vmatpush1.msra.mxu0 %v933
    %953 = vmatprep.subr.mxu0 0.0
    %954 = vmatpush1.msra.mxu0 %v934
    %955 = vmatprep.subr.mxu0 0.0
    %956 = vmatpush1.msra.mxu0 %v935
    %957 = vmatprep.subr.mxu0 0.0
    %958 = vmatpush1.msra.mxu0 %v936
    %959 = vmatprep.subr.mxu0 0.0
    %960 = vmatpush1.msra.mxu0 %v937
    %961 = vmatprep.subr.mxu0 0.0
    %962 = vmatpush1.msra.mxu0 %v938
    %963 = vmatprep.subr.mxu0 0.0
    %964 = vmatpush1.msra.mxu0 %v939
    %965 = vmatprep.subr.mxu0 0.0
    %966 = vmatpush1.msra.mxu0 %v940
    %967 = vmatprep.subr.mxu0 0.0
    %968 = vmatpush1.msra.mxu0 %v941
    %969 = vmatprep.subr.mxu0 0.0
    %970 = vmatpush1.msra.mxu0 %v942
    %971 = vmatprep.subr.mxu0 0.0
    %972 = vmatpush1.msra.mxu0 0.0
    %973 = vmatprep.subr.mxu0 0.0
    %974 = vmatpush1.msra.mxu0 0.0
    %975 = vmatprep.subr.mxu0 0.0
    %976 = vmatpush1.msra.mxu0 0.0
    %977 = vmatprep.subr.mxu0 0.0
    %978 = vmatpush1.msra.mxu0 0.0
    %979 = vmatprep.subr.mxu0 0.0
    %980 = vmatpush1.msra.mxu0 0.0
    %981 = vmatprep.subr.mxu0 0.0
    %982 = vmatpush1.msra.mxu0 0.0
    %983 = vmatprep.subr.mxu0 0.0
    %984 = vmatpush1.msra.mxu0 0.0
    %985 = vmatprep.subr.mxu0 0.0
    %986 = vmatpush1.msra.mxu0 0.0
    %987 = vmatprep.subr.mxu0 0.0
    %988 = vmatpush1.msra.mxu0 0.0
    %989 = vmatprep.subr.mxu0 0.0
    %990 = vmatpush1.msra.mxu0 0.0
    %991 = vmatprep.subr.mxu0 0.0
    %992 = vmatpush1.msra.mxu0 0.0
    %993 = vmatprep.subr.mxu0 0.0
    %994 = vmatpush1.msra.mxu0 0.0
    %995 = vmatprep.subr.mxu0 0.0
    %996 = vmatpush1.msra.mxu0 0.0
    %997 = vmatprep.subr.mxu0 0.0
    %998 = vmatpush1.msra.mxu0 0.0
    %999 = vmatprep.subr.mxu0 0.0
    %1000 = vmatpush1.msra.mxu0 0.0
    %1001 = vmatprep.subr.mxu0 0.0
    %1002 = vmatpush1.msra.mxu0 0.0
    %1003 = vmatprep.subr.mxu0 0.0
    %1004 = vmatpush1.msra.mxu0 0.0
    %1005 = vmatprep.subr.mxu0 0.0
    %1006 = vmatpush1.msra.mxu0 0.0
    %1007 = vmatprep.mubr.f32.mxu0 0.0
    %1008 = vmatmul.mubr.f32.gmra.mrb[0].mxu0 %v830
    %v1009 = vpop.f32.mrb[0].mxu0
    %v1010 = vadd.f32 0.0, %v1009
    %v1011 = vpop.f32.mrb[0].mxu0
    %1012 = vmatprep.mubr.f32.mxu0 0.0
    %1013 = vmatmul.mubr.f32.gmra.mrb[0].mxu0 %v833
    %v1014 = vpop.f32.mrb[0].mxu0
    %v1015 = vadd.f32 0.0, %v1014
    %v1016 = vpop.f32.mrb[0].mxu0
    %1017 = vmatprep.mubr.f32.mxu0 0.0
    %1018 = vmatmul.mubr.f32.gmra.mrb[0].mxu0 %v836
    %v1019 = vpop.f32.mrb[0].mxu0
    %v1020 = vadd.f32 0.0, %v1019
    %v1021 = vpop.f32.mrb[0].mxu0
    %1022 = vmatprep.mubr.f32.mxu0 0.0
    %1023 = vmatmul.mubr.f32.gmra.mrb[0].mxu0 %v839
    %v1024 = vpop.f32.mrb[0].mxu0
    %v1025 = vadd.f32 0.0, %v1024
    %v1026 = vpop.f32.mrb[0].mxu0
    %1027 = vdwg.mxu0
    %s1028 = scalar_lea.vmem [#allocation8], 16
    %v1029 = vld [vmem:[%s1028] sm:$0xff]
    %v1030 = vld [vmem:[%s1028 + $0x8] sm:$0x3f]
    %v1032 = vsel %vm147, %v1029, 0
    %v1035 = vsel %vm147, %v1030, 0
    %v1038 = vsel %vm169, %v1025, 0
    %1040 = vmatprep.subr.mxu0 0.0
    %1041 = vmatpush1.msra.mxu0 %v1010
    %1042 = vmatprep.subr.mxu0 0.0
    %1043 = vmatpush1.msra.mxu0 %v1015
    %1044 = vmatprep.subr.mxu0 0.0
    %1045 = vmatpush1.msra.mxu0 %v1020
    %1046 = vmatprep.subr.mxu0 0.0
    %1047 = vmatpush1.msra.mxu0 %v1038
    %1048 = vmatprep.subr.mxu0 0.0
    %1049 = vmatpush1.msra.mxu0 0.0
    %1050 = vmatprep.subr.mxu0 0.0
    %1051 = vmatpush1.msra.mxu0 0.0
    %1052 = vmatprep.subr.mxu0 0.0
    %1053 = vmatpush1.msra.mxu0 0.0
    %1054 = vmatprep.subr.mxu0 0.0
    %1055 = vmatpush1.msra.mxu0 0.0
    %1056 = vmatprep.subr.mxu0 0.0
    %1057 = vmatpush1.msra.mxu0 0.0
    %1058 = vmatprep.subr.mxu0 0.0
    %1059 = vmatpush1.msra.mxu0 0.0
    %1060 = vmatprep.subr.mxu0 0.0
    %1061 = vmatpush1.msra.mxu0 0.0
    %1062 = vmatprep.subr.mxu0 0.0
    %1063 = vmatpush1.msra.mxu0 0.0
    %1064 = vmatprep.subr.mxu0 0.0
    %1065 = vmatpush1.msra.mxu0 0.0
    %1066 = vmatprep.subr.mxu0 0.0
    %1067 = vmatpush1.msra.mxu0 0.0
    %1068 = vmatprep.subr.mxu0 0.0
    %1069 = vmatpush1.msra.mxu0 0.0
    %1070 = vmatprep.subr.mxu0 0.0
    %1071 = vmatpush1.msra.mxu0 0.0
    %1072 = vmatprep.subr.mxu0 0.0
    %1073 = vmatpush1.msra.mxu0 0.0
    %1074 = vmatprep.subr.mxu0 0.0
    %1075 = vmatpush1.msra.mxu0 0.0
    %1076 = vmatprep.subr.mxu0 0.0
    %1077 = vmatpush1.msra.mxu0 0.0
    %1078 = vmatprep.subr.mxu0 0.0
    %1079 = vmatpush1.msra.mxu0 0.0
    %1080 = vmatprep.subr.mxu0 0.0
    %1081 = vmatpush1.msra.mxu0 0.0
    %1082 = vmatprep.subr.mxu0 0.0
    %1083 = vmatpush1.msra.mxu0 0.0
    %1084 = vmatprep.subr.mxu0 0.0
    %1085 = vmatpush1.msra.mxu0 0.0
    %1086 = vmatprep.subr.mxu0 0.0
    %1087 = vmatpush1.msra.mxu0 0.0
    %1088 = vmatprep.subr.mxu0 0.0
    %1089 = vmatpush1.msra.mxu0 0.0
    %1090 = vmatprep.subr.mxu0 0.0
    %1091 = vmatpush1.msra.mxu0 0.0
    %1092 = vmatprep.subr.mxu0 0.0
    %1093 = vmatpush1.msra.mxu0 0.0
    %1094 = vmatprep.subr.mxu0 0.0
    %1095 = vmatpush1.msra.mxu0 0.0
    %1096 = vmatprep.subr.mxu0 0.0
    %1097 = vmatpush1.msra.mxu0 0.0
    %1098 = vmatprep.subr.mxu0 0.0
    %1099 = vmatpush1.msra.mxu0 0.0
    %1100 = vmatprep.subr.mxu0 0.0
    %1101 = vmatpush1.msra.mxu0 0.0
    %1102 = vmatprep.subr.mxu0 0.0
    %1103 = vmatpush1.msra.mxu0 0.0
    %1104 = vmatprep.mubr.f32.mxu0 0.0
    %1105 = vmatmul.mubr.f32.gmra.mrb[0].mxu0 %v1032
    %v1106 = vpop.f32.mrb[0].mxu0
    %v1107 = vadd.f32 0.0, %v1106
    %v1108 = vpop.f32.mrb[0].mxu0
    %1109 = vmatprep.mubr.f32.mxu0 0.0
    %1110 = vmatmul.mubr.f32.gmra.mrb[0].mxu0 %v1035
    %v1111 = vpop.f32.mrb[0].mxu0
    %v1112 = vadd.f32 0.0, %v1111
    %v1113 = vpop.f32.mrb[0].mxu0
    %1114 = vdwg.mxu0
    %v1116 = vsel %vm147, %v926, 0
    %v1119 = vsel %vm147, %v927, 0
    %v1122 = vsel %vm169, %v923, 0
    %1124 = vmatprep.subr.mxu0 0.0
    %1125 = vmatpush1.msra.mxu0 %v908
    %1126 = vmatprep.subr.mxu0 0.0
    %1127 = vmatpush1.msra.mxu0 %v913
    %1128 = vmatprep.subr.mxu0 0.0
    %1129 = vmatpush1.msra.mxu0 %v918
    %1130 = vmatprep.subr.mxu0 0.0
    %1131 = vmatpush1.msra.mxu0 %v1122
    %1132 = vmatprep.subr.mxu0 0.0
    %1133 = vmatpush1.msra.mxu0 0.0
    %1134 = vmatprep.subr.mxu0 0.0
    %1135 = vmatpush1.msra.mxu0 0.0
    %1136 = vmatprep.subr.mxu0 0.0
    %1137 = vmatpush1.msra.mxu0 0.0
    %1138 = vmatprep.subr.mxu0 0.0
    %1139 = vmatpush1.msra.mxu0 0.0
    %1140 = vmatprep.subr.mxu0 0.0
    %1141 = vmatpush1.msra.mxu0 0.0
    %1142 = vmatprep.subr.mxu0 0.0
    %1143 = vmatpush1.msra.mxu0 0.0
    %1144 = vmatprep.subr.mxu0 0.0
    %1145 = vmatpush1.msra.mxu0 0.0
    %1146 = vmatprep.subr.mxu0 0.0
    %1147 = vmatpush1.msra.mxu0 0.0
    %1148 = vmatprep.subr.mxu0 0.0
    %1149 = vmatpush1.msra.mxu0 0.0
    %1150 = vmatprep.subr.mxu0 0.0
    %1151 = vmatpush1.msra.mxu0 0.0
    %1152 = vmatprep.subr.mxu0 0.0
    %1153 = vmatpush1.msra.mxu0 0.0
    %1154 = vmatprep.subr.mxu0 0.0
    %1155 = vmatpush1.msra.mxu0 0.0
    %1156 = vmatprep.subr.mxu0 0.0
    %1157 = vmatpush1.msra.mxu0 0.0
    %1158 = vmatprep.subr.mxu0 0.0
    %1159 = vmatpush1.msra.mxu0 0.0
    %1160 = vmatprep.subr.mxu0 0.0
    %1161 = vmatpush1.msra.mxu0 0.0
    %1162 = vmatprep.subr.mxu0 0.0
    %1163 = vmatpush1.msra.mxu0 0.0
    %1164 = vmatprep.subr.mxu0 0.0
    %1165 = vmatpush1.msra.mxu0 0.0
    %1166 = vmatprep.subr.mxu0 0.0
    %1167 = vmatpush1.msra.mxu0 0.0
    %1168 = vmatprep.subr.mxu0 0.0
    %1169 = vmatpush1.msra.mxu0 0.0
    %1170 = vmatprep.subr.mxu0 0.0
    %1171 = vmatpush1.msra.mxu0 0.0
    %1172 = vmatprep.subr.mxu0 0.0
    %1173 = vmatpush1.msra.mxu0 0.0
    %1174 = vmatprep.subr.mxu0 0.0
    %1175 = vmatpush1.msra.mxu0 0.0
    %1176 = vmatprep.subr.mxu0 0.0
    %1177 = vmatpush1.msra.mxu0 0.0
    %1178 = vmatprep.subr.mxu0 0.0
    %1179 = vmatpush1.msra.mxu0 0.0
    %1180 = vmatprep.subr.mxu0 0.0
    %1181 = vmatpush1.msra.mxu0 0.0
    %1182 = vmatprep.subr.mxu0 0.0
    %1183 = vmatpush1.msra.mxu0 0.0
    %1184 = vmatprep.subr.mxu0 0.0
    %1185 = vmatpush1.msra.mxu0 0.0
    %1186 = vmatprep.subr.mxu0 0.0
    %1187 = vmatpush1.msra.mxu0 0.0
    %1188 = vmatprep.mubr.f32.mxu0 0.0
    %1189 = vmatmul.mubr.f32.gmra.mrb[0].mxu0 %v1116
    %v1190 = vpop.f32.mrb[0].mxu0
    %v1191 = vadd.f32 %v1107, %v1190
    %v1192 = vpop.f32.mrb[0].mxu0
    %1193 = vmatprep.mubr.f32.mxu0 0.0
    %1194 = vmatmul.mubr.f32.gmra.mrb[0].mxu0 %v1119
    %v1195 = vpop.f32.mrb[0].mxu0
    %v1196 = vadd.f32 %v1112, %v1195
    %v1197 = vpop.f32.mrb[0].mxu0
    %1198 = vdwg.mxu0
    %s1199 = scalar_lea.vmem %s5, 224
    %v1200 = vld [vmem:[%s1199] sm:$0xff]
    %v1201 = vld [vmem:[%s1199 + $0x8] sm:$0xff]
    %v1202 = vld [vmem:[%s1199 + $0x10] sm:$0xff]
    %v1203 = vld [vmem:[%s1199 + $0x18] sm:$0xff]
    %v1204 = vld [vmem:[%s1199 + $0x20] sm:$0xff]
    %v1205 = vld [vmem:[%s1199 + $0x28] sm:$0xff]
    %v1206 = vld [vmem:[%s1199 + $0x30] sm:$0xff]
    %v1207 = vld [vmem:[%s1199 + $0x38] sm:$0xff]
    %v1208 = vld [vmem:[%s1199 + $0x40] sm:$0xff]
    %v1209 = vld [vmem:[%s1199 + $0x48] sm:$0xff]
    %v1210 = vld [vmem:[%s1199 + $0x50] sm:$0xff]
    %v1211 = vld [vmem:[%s1199 + $0x58] sm:$0xff]
    %v1212 = vld [vmem:[%s1199 + $0x60] sm:$0xff]
    %v1213 = vld [vmem:[%s1199 + $0x68] sm:$0xff]
    %1214 = vmatprep.subr.mxu0 0.0
    %1215 = vmatpush1.msra.mxu0 %v1200
    %1216 = vmatprep.subr.mxu0 0.0
    %1217 = vmatpush1.msra.mxu0 %v1201
    %1218 = vmatprep.subr.mxu0 0.0
    %1219 = vmatpush1.msra.mxu0 %v1202
    %1220 = vmatprep.subr.mxu0 0.0
    %1221 = vmatpush1.msra.mxu0 %v1203
    %1222 = vmatprep.subr.mxu0 0.0
    %1223 = vmatpush1.msra.mxu0 %v1204
    %1224 = vmatprep.subr.mxu0 0.0
    %1225 = vmatpush1.msra.mxu0 %v1205
    %1226 = vmatprep.subr.mxu0 0.0
    %1227 = vmatpush1.msra.mxu0 %v1206
    %1228 = vmatprep.subr.mxu0 0.0
    %1229 = vmatpush1.msra.mxu0 %v1207
    %1230 = vmatprep.subr.mxu0 0.0
    %1231 = vmatpush1.msra.mxu0 %v1208
    %1232 = vmatprep.subr.mxu0 0.0
    %1233 = vmatpush1.msra.mxu0 %v1209
    %1234 = vmatprep.subr.mxu0 0.0
    %1235 = vmatpush1.msra.mxu0 %v1210
    %1236 = vmatprep.subr.mxu0 0.0
    %1237 = vmatpush1.msra.mxu0 %v1211
    %1238 = vmatprep.subr.mxu0 0.0
    %1239 = vmatpush1.msra.mxu0 %v1212
    %1240 = vmatprep.subr.mxu0 0.0
    %1241 = vmatpush1.msra.mxu0 %v1213
    %1242 = vmatprep.subr.mxu0 0.0
    %1243 = vmatpush1.msra.mxu0 0.0
    %1244 = vmatprep.subr.mxu0 0.0
    %1245 = vmatpush1.msra.mxu0 0.0
    %1246 = vmatprep.subr.mxu0 0.0
    %1247 = vmatpush1.msra.mxu0 0.0
    %1248 = vmatprep.subr.mxu0 0.0
    %1249 = vmatpush1.msra.mxu0 0.0
    %1250 = vmatprep.subr.mxu0 0.0
    %1251 = vmatpush1.msra.mxu0 0.0
    %1252 = vmatprep.subr.mxu0 0.0
    %1253 = vmatpush1.msra.mxu0 0.0
    %1254 = vmatprep.subr.mxu0 0.0
    %1255 = vmatpush1.msra.mxu0 0.0
    %1256 = vmatprep.subr.mxu0 0.0
    %1257 = vmatpush1.msra.mxu0 0.0
    %1258 = vmatprep.subr.mxu0 0.0
    %1259 = vmatpush1.msra.mxu0 0.0
    %1260 = vmatprep.subr.mxu0 0.0
    %1261 = vmatpush1.msra.mxu0 0.0
    %1262 = vmatprep.subr.mxu0 0.0
    %1263 = vmatpush1.msra.mxu0 0.0
    %1264 = vmatprep.subr.mxu0 0.0
    %1265 = vmatpush1.msra.mxu0 0.0
    %1266 = vmatprep.subr.mxu0 0.0
    %1267 = vmatpush1.msra.mxu0 0.0
    %1268 = vmatprep.subr.mxu0 0.0
    %1269 = vmatpush1.msra.mxu0 0.0
    %1270 = vmatprep.subr.mxu0 0.0
    %1271 = vmatpush1.msra.mxu0 0.0
    %1272 = vmatprep.subr.mxu0 0.0
    %1273 = vmatpush1.msra.mxu0 0.0
    %1274 = vmatprep.subr.mxu0 0.0
    %1275 = vmatpush1.msra.mxu0 0.0
    %1276 = vmatprep.subr.mxu0 0.0
    %1277 = vmatpush1.msra.mxu0 0.0
    %1278 = vmatprep.mubr.f32.mxu0 0.0
    %1279 = vmatmul.mubr.f32.gmra.mrb[0].mxu0 %v830
    %v1280 = vpop.f32.mrb[0].mxu0
    %v1281 = vadd.f32 0.0, %v1280
    %v1282 = vpop.f32.mrb[0].mxu0
    %1283 = vmatprep.mubr.f32.mxu0 0.0
    %1284 = vmatmul.mubr.f32.gmra.mrb[0].mxu0 %v833
    %v1285 = vpop.f32.mrb[0].mxu0
    %v1286 = vadd.f32 0.0, %v1285
    %v1287 = vpop.f32.mrb[0].mxu0
    %1288 = vmatprep.mubr.f32.mxu0 0.0
    %1289 = vmatmul.mubr.f32.gmra.mrb[0].mxu0 %v836
    %v1290 = vpop.f32.mrb[0].mxu0
    %v1291 = vadd.f32 0.0, %v1290
    %v1292 = vpop.f32.mrb[0].mxu0
    %1293 = vmatprep.mubr.f32.mxu0 0.0
    %1294 = vmatmul.mubr.f32.gmra.mrb[0].mxu0 %v839
    %v1295 = vpop.f32.mrb[0].mxu0
    %v1296 = vadd.f32 0.0, %v1295
    %v1297 = vpop.f32.mrb[0].mxu0
    %1298 = vdwg.mxu0
    %s1299 = scalar_lea.vmem [#allocation8], 32
    %v1300 = vld [vmem:[%s1299] sm:$0xff]
    %v1301 = vld [vmem:[%s1299 + $0x8] sm:$0x3f]
    %v1303 = vsel %vm147, %v1300, 0
    %v1306 = vsel %vm147, %v1301, 0
    %v1309 = vsel %vm169, %v1296, 0
    %1311 = vmatprep.subr.mxu0 0.0
    %1312 = vmatpush1.msra.mxu0 %v1281
    %1313 = vmatprep.subr.mxu0 0.0
    %1314 = vmatpush1.msra.mxu0 %v1286
    %1315 = vmatprep.subr.mxu0 0.0
    %1316 = vmatpush1.msra.mxu0 %v1291
    %1317 = vmatprep.subr.mxu0 0.0
    %1318 = vmatpush1.msra.mxu0 %v1309
    %1319 = vmatprep.subr.mxu0 0.0
    %1320 = vmatpush1.msra.mxu0 0.0
    %1321 = vmatprep.subr.mxu0 0.0
    %1322 = vmatpush1.msra.mxu0 0.0
    %1323 = vmatprep.subr.mxu0 0.0
    %1324 = vmatpush1.msra.mxu0 0.0
    %1325 = vmatprep.subr.mxu0 0.0
    %1326 = vmatpush1.msra.mxu0 0.0
    %1327 = vmatprep.subr.mxu0 0.0
    %1328 = vmatpush1.msra.mxu0 0.0
    %1329 = vmatprep.subr.mxu0 0.0
    %1330 = vmatpush1.msra.mxu0 0.0
    %1331 = vmatprep.subr.mxu0 0.0
    %1332 = vmatpush1.msra.mxu0 0.0
    %1333 = vmatprep.subr.mxu0 0.0
    %1334 = vmatpush1.msra.mxu0 0.0
    %1335 = vmatprep.subr.mxu0 0.0
    %1336 = vmatpush1.msra.mxu0 0.0
    %1337 = vmatprep.subr.mxu0 0.0
    %1338 = vmatpush1.msra.mxu0 0.0
    %1339 = vmatprep.subr.mxu0 0.0
    %1340 = vmatpush1.msra.mxu0 0.0
    %1341 = vmatprep.subr.mxu0 0.0
    %1342 = vmatpush1.msra.mxu0 0.0
    %1343 = vmatprep.subr.mxu0 0.0
    %1344 = vmatpush1.msra.mxu0 0.0
    %1345 = vmatprep.subr.mxu0 0.0
    %1346 = vmatpush1.msra.mxu0 0.0
    %1347 = vmatprep.subr.mxu0 0.0
    %1348 = vmatpush1.msra.mxu0 0.0
    %1349 = vmatprep.subr.mxu0 0.0
    %1350 = vmatpush1.msra.mxu0 0.0
    %1351 = vmatprep.subr.mxu0 0.0
    %1352 = vmatpush1.msra.mxu0 0.0
    %1353 = vmatprep.subr.mxu0 0.0
    %1354 = vmatpush1.msra.mxu0 0.0
    %1355 = vmatprep.subr.mxu0 0.0
    %1356 = vmatpush1.msra.mxu0 0.0
    %1357 = vmatprep.subr.mxu0 0.0
    %1358 = vmatpush1.msra.mxu0 0.0
    %1359 = vmatprep.subr.mxu0 0.0
    %1360 = vmatpush1.msra.mxu0 0.0
    %1361 = vmatprep.subr.mxu0 0.0
    %1362 = vmatpush1.msra.mxu0 0.0
    %1363 = vmatprep.subr.mxu0 0.0
    %1364 = vmatpush1.msra.mxu0 0.0
    %1365 = vmatprep.subr.mxu0 0.0
    %1366 = vmatpush1.msra.mxu0 0.0
    %1367 = vmatprep.subr.mxu0 0.0
    %1368 = vmatpush1.msra.mxu0 0.0
    %1369 = vmatprep.subr.mxu0 0.0
    %1370 = vmatpush1.msra.mxu0 0.0
    %1371 = vmatprep.subr.mxu0 0.0
    %1372 = vmatpush1.msra.mxu0 0.0
    %1373 = vmatprep.subr.mxu0 0.0
    %1374 = vmatpush1.msra.mxu0 0.0
    %1375 = vmatprep.mubr.f32.mxu0 0.0
    %1376 = vmatmul.mubr.f32.gmra.mrb[0].mxu0 %v1303
    %v1377 = vpop.f32.mrb[0].mxu0
    %v1378 = vadd.f32 0.0, %v1377
    %v1379 = vpop.f32.mrb[0].mxu0
    %1380 = vmatprep.mubr.f32.mxu0 0.0
    %1381 = vmatmul.mubr.f32.gmra.mrb[0].mxu0 %v1306
    %v1382 = vpop.f32.mrb[0].mxu0
    %v1383 = vadd.f32 0.0, %v1382
    %v1384 = vpop.f32.mrb[0].mxu0
    %1385 = vdwg.mxu0
    %v1386 = vadd.f32 %v1191, %v1378
    %v1387 = vadd.f32 %v1196, %v1383
    %v1388 = vld [vmem:[%s6] sm:$0x1]
    %v1390 = vlaneseq
    %v1391 = vshrl.u32 %v1390, 7
    %v1392 = vsub.s32 0, %v1391
    %v1393 = vrot.slane %v1388, %v1392
    %v1395 = vadd.f32 %v1386, %v1393
    %v1396 = vadd.f32 %v1387, %v1393
    %v1397 = vmax.f32 %v1395, 0.0
    %v1398 = vmax.f32 %v1396, 0.0
    %v1399 = vld [vmem:[%s8] sm:$0xff]
    %v1400 = vld [vmem:[%s8 + $0x8] sm:$0xff]
    %v1401 = vld [vmem:[%s8 + $0x10] sm:$0xff]
    %v1402 = vld [vmem:[%s8 + $0x18] sm:$0xff]
    %v1403 = vld [vmem:[%s8 + $0x20] sm:$0xff]
    %v1404 = vld [vmem:[%s8 + $0x28] sm:$0xff]
    %v1405 = vld [vmem:[%s8 + $0x30] sm:$0xff]
    %v1406 = vld [vmem:[%s8 + $0x38] sm:$0xff]
    %v1407 = vld [vmem:[%s8 + $0x40] sm:$0xff]
    %v1408 = vld [vmem:[%s8 + $0x48] sm:$0xff]
    %v1409 = vld [vmem:[%s8 + $0x50] sm:$0xff]
    %v1410 = vld [vmem:[%s8 + $0x58] sm:$0xff]
    %v1411 = vld [vmem:[%s8 + $0x60] sm:$0xff]
    %v1412 = vld [vmem:[%s8 + $0x68] sm:$0xff]
    %v1414 = vsel %vm828, %v1397, 0
    %v1417 = vsel %vm828, %v1398, 0
    %1419 = vmatprep.subr.mxu0 0.0
    %1420 = vmatpush1.msra.mxu0 %v1399
    %1421 = vmatprep.subr.mxu0 0.0
    %1422 = vmatpush1.msra.mxu0 %v1400
    %1423 = vmatprep.subr.mxu0 0.0
    %1424 = vmatpush1.msra.mxu0 %v1401
    %1425 = vmatprep.subr.mxu0 0.0
    %1426 = vmatpush1.msra.mxu0 %v1402
    %1427 = vmatprep.subr.mxu0 0.0
    %1428 = vmatpush1.msra.mxu0 %v1403
    %1429 = vmatprep.subr.mxu0 0.0
    %1430 = vmatpush1.msra.mxu0 %v1404
    %1431 = vmatprep.subr.mxu0 0.0
    %1432 = vmatpush1.msra.mxu0 %v1405
    %1433 = vmatprep.subr.mxu0 0.0
    %1434 = vmatpush1.msra.mxu0 %v1406
    %1435 = vmatprep.subr.mxu0 0.0
    %1436 = vmatpush1.msra.mxu0 %v1407
    %1437 = vmatprep.subr.mxu0 0.0
    %1438 = vmatpush1.msra.mxu0 %v1408
    %1439 = vmatprep.subr.mxu0 0.0
    %1440 = vmatpush1.msra.mxu0 %v1409
    %1441 = vmatprep.subr.mxu0 0.0
    %1442 = vmatpush1.msra.mxu0 %v1410
    %1443 = vmatprep.subr.mxu0 0.0
    %1444 = vmatpush1.msra.mxu0 %v1411
    %1445 = vmatprep.subr.mxu0 0.0
    %1446 = vmatpush1.msra.mxu0 %v1412
    %1447 = vmatprep.subr.mxu0 0.0
    %1448 = vmatpush1.msra.mxu0 0.0
    %1449 = vmatprep.subr.mxu0 0.0
    %1450 = vmatpush1.msra.mxu0 0.0
    %1451 = vmatprep.subr.mxu0 0.0
    %1452 = vmatpush1.msra.mxu0 0.0
    %1453 = vmatprep.subr.mxu0 0.0
    %1454 = vmatpush1.msra.mxu0 0.0
    %1455 = vmatprep.subr.mxu0 0.0
    %1456 = vmatpush1.msra.mxu0 0.0
    %1457 = vmatprep.subr.mxu0 0.0
    %1458 = vmatpush1.msra.mxu0 0.0
    %1459 = vmatprep.subr.mxu0 0.0
    %1460 = vmatpush1.msra.mxu0 0.0
    %1461 = vmatprep.subr.mxu0 0.0
    %1462 = vmatpush1.msra.mxu0 0.0
    %1463 = vmatprep.subr.mxu0 0.0
    %1464 = vmatpush1.msra.mxu0 0.0
    %1465 = vmatprep.subr.mxu0 0.0
    %1466 = vmatpush1.msra.mxu0 0.0
    %1467 = vmatprep.subr.mxu0 0.0
    %1468 = vmatpush1.msra.mxu0 0.0
    %1469 = vmatprep.subr.mxu0 0.0
    %1470 = vmatpush1.msra.mxu0 0.0
    %1471 = vmatprep.subr.mxu0 0.0
    %1472 = vmatpush1.msra.mxu0 0.0
    %1473 = vmatprep.subr.mxu0 0.0
    %1474 = vmatpush1.msra.mxu0 0.0
    %1475 = vmatprep.subr.mxu0 0.0
    %1476 = vmatpush1.msra.mxu0 0.0
    %1477 = vmatprep.subr.mxu0 0.0
    %1478 = vmatpush1.msra.mxu0 0.0
    %1479 = vmatprep.subr.mxu0 0.0
    %1480 = vmatpush1.msra.mxu0 0.0
    %1481 = vmatprep.subr.mxu0 0.0
    %1482 = vmatpush1.msra.mxu0 0.0
    %1483 = vmatprep.mubr.f32.mxu0 0.0
    %1484 = vmatmul.mubr.f32.gmra.mrb[0].mxu0 %v1414
    %v1485 = vpop.f32.mrb[0].mxu0
    %v1486 = vadd.f32 0.0, %v1485
    %v1487 = vpop.f32.mrb[0].mxu0
    %1488 = vmatprep.mubr.f32.mxu0 0.0
    %1489 = vmatmul.mubr.f32.gmra.mrb[0].mxu0 %v1417
    %v1490 = vpop.f32.mrb[0].mxu0
    %v1491 = vadd.f32 0.0, %v1490
    %v1492 = vpop.f32.mrb[0].mxu0
    %1493 = vdwg.mxu0
    %v1494 = vld [vmem:[%s7] sm:$0x3f]
    %s1495 = scalar_lea.vmem %s8, 112
    %v1496 = vld [vmem:[%s1495] sm:$0xff]
    %v1497 = vld [vmem:[%s1495 + $0x8] sm:$0xff]
    %v1498 = vld [vmem:[%s1495 + $0x10] sm:$0xff]
    %v1499 = vld [vmem:[%s1495 + $0x18] sm:$0xff]
    %v1500 = vld [vmem:[%s1495 + $0x20] sm:$0xff]
    %v1501 = vld [vmem:[%s1495 + $0x28] sm:$0xff]
    %v1502 = vld [vmem:[%s1495 + $0x30] sm:$0xff]
    %v1503 = vld [vmem:[%s1495 + $0x38] sm:$0xff]
    %v1504 = vld [vmem:[%s1495 + $0x40] sm:$0xff]
    %v1505 = vld [vmem:[%s1495 + $0x48] sm:$0xff]
    %v1506 = vld [vmem:[%s1495 + $0x50] sm:$0xff]
    %v1507 = vld [vmem:[%s1495 + $0x58] sm:$0xff]
    %v1508 = vld [vmem:[%s1495 + $0x60] sm:$0xff]
    %v1509 = vld [vmem:[%s1495 + $0x68] sm:$0xff]
    %1510 = vmatprep.subr.mxu0 0.0
    %1511 = vmatpush1.msra.mxu0 %v1496
    %1512 = vmatprep.subr.mxu0 0.0
    %1513 = vmatpush1.msra.mxu0 %v1497
    %1514 = vmatprep.subr.mxu0 0.0
    %1515 = vmatpush1.msra.mxu0 %v1498
    %1516 = vmatprep.subr.mxu0 0.0
    %1517 = vmatpush1.msra.mxu0 %v1499
    %1518 = vmatprep.subr.mxu0 0.0
    %1519 = vmatpush1.msra.mxu0 %v1500
    %1520 = vmatprep.subr.mxu0 0.0
    %1521 = vmatpush1.msra.mxu0 %v1501
    %1522 = vmatprep.subr.mxu0 0.0
    %1523 = vmatpush1.msra.mxu0 %v1502
    %1524 = vmatprep.subr.mxu0 0.0
    %1525 = vmatpush1.msra.mxu0 %v1503
    %1526 = vmatprep.subr.mxu0 0.0
    %1527 = vmatpush1.msra.mxu0 %v1504
    %1528 = vmatprep.subr.mxu0 0.0
    %1529 = vmatpush1.msra.mxu0 %v1505
    %1530 = vmatprep.subr.mxu0 0.0
    %1531 = vmatpush1.msra.mxu0 %v1506
    %1532 = vmatprep.subr.mxu0 0.0
    %1533 = vmatpush1.msra.mxu0 %v1507
    %1534 = vmatprep.subr.mxu0 0.0
    %1535 = vmatpush1.msra.mxu0 %v1508
    %1536 = vmatprep.subr.mxu0 0.0
    %1537 = vmatpush1.msra.mxu0 %v1509
    %1538 = vmatprep.subr.mxu0 0.0
    %1539 = vmatpush1.msra.mxu0 0.0
    %1540 = vmatprep.subr.mxu0 0.0
    %1541 = vmatpush1.msra.mxu0 0.0
    %1542 = vmatprep.subr.mxu0 0.0
    %1543 = vmatpush1.msra.mxu0 0.0
    %1544 = vmatprep.subr.mxu0 0.0
    %1545 = vmatpush1.msra.mxu0 0.0
    %1546 = vmatprep.subr.mxu0 0.0
    %1547 = vmatpush1.msra.mxu0 0.0
    %1548 = vmatprep.subr.mxu0 0.0
    %1549 = vmatpush1.msra.mxu0 0.0
    %1550 = vmatprep.subr.mxu0 0.0
    %1551 = vmatpush1.msra.mxu0 0.0
    %1552 = vmatprep.subr.mxu0 0.0
    %1553 = vmatpush1.msra.mxu0 0.0
    %1554 = vmatprep.subr.mxu0 0.0
    %1555 = vmatpush1.msra.mxu0 0.0
    %1556 = vmatprep.subr.mxu0 0.0
    %1557 = vmatpush1.msra.mxu0 0.0
    %1558 = vmatprep.subr.mxu0 0.0
    %1559 = vmatpush1.msra.mxu0 0.0
    %1560 = vmatprep.subr.mxu0 0.0
    %1561 = vmatpush1.msra.mxu0 0.0
    %1562 = vmatprep.subr.mxu0 0.0
    %1563 = vmatpush1.msra.mxu0 0.0
    %1564 = vmatprep.subr.mxu0 0.0
    %1565 = vmatpush1.msra.mxu0 0.0
    %1566 = vmatprep.subr.mxu0 0.0
    %1567 = vmatpush1.msra.mxu0 0.0
    %1568 = vmatprep.subr.mxu0 0.0
    %1569 = vmatpush1.msra.mxu0 0.0
    %1570 = vmatprep.subr.mxu0 0.0
    %1571 = vmatpush1.msra.mxu0 0.0
    %1572 = vmatprep.subr.mxu0 0.0
    %1573 = vmatpush1.msra.mxu0 0.0
    %1574 = vmatprep.mubr.f32.mxu0 0.0
    %1575 = vmatmul.mubr.f32.gmra.mrb[0].mxu0 %v1414
    %v1576 = vpop.f32.mrb[0].mxu0
    %v1577 = vadd.f32 0.0, %v1576
    %v1578 = vpop.f32.mrb[0].mxu0
    %1579 = vmatprep.mubr.f32.mxu0 0.0
    %1580 = vmatmul.mubr.f32.gmra.mrb[0].mxu0 %v1417
    %v1581 = vpop.f32.mrb[0].mxu0
    %v1582 = vadd.f32 0.0, %v1581
    %v1583 = vpop.f32.mrb[0].mxu0
    %1584 = vdwg.mxu0
    %s1585 = scalar_lea.vmem %s7, 8
    %v1586 = vld [vmem:[%s1585] sm:$0x3f]
    %vm1587 = vcmask 113664
    %v1589 = vsel %vm1587, %v1586, 0
    %vm1591 = vcmask 1045504
    %v1593 = vsel %vm1591, %v1582, 0
    %1595 = vmatprep.subr.mxu0 0.0
    %1596 = vmatpush1.msra.mxu0 %v1577
    %1597 = vmatprep.subr.mxu0 0.0
    %1598 = vmatpush1.msra.mxu0 %v1593
    %1599 = vmatprep.subr.mxu0 0.0
    %1600 = vmatpush1.msra.mxu0 0.0
    %1601 = vmatprep.subr.mxu0 0.0
    %1602 = vmatpush1.msra.mxu0 0.0
    %1603 = vmatprep.subr.mxu0 0.0
    %1604 = vmatpush1.msra.mxu0 0.0
    %1605 = vmatprep.subr.mxu0 0.0
    %1606 = vmatpush1.msra.mxu0 0.0
    %1607 = vmatprep.subr.mxu0 0.0
    %1608 = vmatpush1.msra.mxu0 0.0
    %1609 = vmatprep.subr.mxu0 0.0
    %1610 = vmatpush1.msra.mxu0 0.0
    %1611 = vmatprep.subr.mxu0 0.0
    %1612 = vmatpush1.msra.mxu0 0.0
    %1613 = vmatprep.subr.mxu0 0.0
    %1614 = vmatpush1.msra.mxu0 0.0
    %1615 = vmatprep.subr.mxu0 0.0
    %1616 = vmatpush1.msra.mxu0 0.0
    %1617 = vmatprep.subr.mxu0 0.0
    %1618 = vmatpush1.msra.mxu0 0.0
    %1619 = vmatprep.subr.mxu0 0.0
    %1620 = vmatpush1.msra.mxu0 0.0
    %1621 = vmatprep.subr.mxu0 0.0
    %1622 = vmatpush1.msra.mxu0 0.0
    %1623 = vmatprep.subr.mxu0 0.0
    %1624 = vmatpush1.msra.mxu0 0.0
    %1625 = vmatprep.subr.mxu0 0.0
    %1626 = vmatpush1.msra.mxu0 0.0
    %1627 = vmatprep.subr.mxu0 0.0
    %1628 = vmatpush1.msra.mxu0 0.0
    %1629 = vmatprep.subr.mxu0 0.0
    %1630 = vmatpush1.msra.mxu0 0.0
    %1631 = vmatprep.subr.mxu0 0.0
    %1632 = vmatpush1.msra.mxu0 0.0
    %1633 = vmatprep.subr.mxu0 0.0
    %1634 = vmatpush1.msra.mxu0 0.0
    %1635 = vmatprep.subr.mxu0 0.0
    %1636 = vmatpush1.msra.mxu0 0.0
    %1637 = vmatprep.subr.mxu0 0.0
    %1638 = vmatpush1.msra.mxu0 0.0
    %1639 = vmatprep.subr.mxu0 0.0
    %1640 = vmatpush1.msra.mxu0 0.0
    %1641 = vmatprep.subr.mxu0 0.0
    %1642 = vmatpush1.msra.mxu0 0.0
    %1643 = vmatprep.subr.mxu0 0.0
    %1644 = vmatpush1.msra.mxu0 0.0
    %1645 = vmatprep.subr.mxu0 0.0
    %1646 = vmatpush1.msra.mxu0 0.0
    %1647 = vmatprep.subr.mxu0 0.0
    %1648 = vmatpush1.msra.mxu0 0.0
    %1649 = vmatprep.subr.mxu0 0.0
    %1650 = vmatpush1.msra.mxu0 0.0
    %1651 = vmatprep.subr.mxu0 0.0
    %1652 = vmatpush1.msra.mxu0 0.0
    %1653 = vmatprep.subr.mxu0 0.0
    %1654 = vmatpush1.msra.mxu0 0.0
    %1655 = vmatprep.subr.mxu0 0.0
    %1656 = vmatpush1.msra.mxu0 0.0
    %1657 = vmatprep.subr.mxu0 0.0
    %1658 = vmatpush1.msra.mxu0 0.0
    %1659 = vmatprep.mubr.f32.mxu0 0.0
    %1660 = vmatmul.mubr.f32.gmra.mrb[0].mxu0 %v1589
    %v1661 = vpop.f32.mrb[0].mxu0
    %v1662 = vadd.f32 0.0, %v1661
    %v1663 = vpop.f32.mrb[0].mxu0
    %1664 = vdwg.mxu0
    %v1666 = vsel %vm1587, %v1494, 0
    %v1669 = vsel %vm1591, %v1491, 0
    %1671 = vmatprep.subr.mxu0 0.0
    %1672 = vmatpush1.msra.mxu0 %v1486
    %1673 = vmatprep.subr.mxu0 0.0
    %1674 = vmatpush1.msra.mxu0 %v1669
    %1675 = vmatprep.subr.mxu0 0.0
    %1676 = vmatpush1.msra.mxu0 0.0
    %1677 = vmatprep.subr.mxu0 0.0
    %1678 = vmatpush1.msra.mxu0 0.0
    %1679 = vmatprep.subr.mxu0 0.0
    %1680 = vmatpush1.msra.mxu0 0.0
    %1681 = vmatprep.subr.mxu0 0.0
    %1682 = vmatpush1.msra.mxu0 0.0
    %1683 = vmatprep.subr.mxu0 0.0
    %1684 = vmatpush1.msra.mxu0 0.0
    %1685 = vmatprep.subr.mxu0 0.0
    %1686 = vmatpush1.msra.mxu0 0.0
    %1687 = vmatprep.subr.mxu0 0.0
    %1688 = vmatpush1.msra.mxu0 0.0
    %1689 = vmatprep.subr.mxu0 0.0
    %1690 = vmatpush1.msra.mxu0 0.0
    %1691 = vmatprep.subr.mxu0 0.0
    %1692 = vmatpush1.msra.mxu0 0.0
    %1693 = vmatprep.subr.mxu0 0.0
    %1694 = vmatpush1.msra.mxu0 0.0
    %1695 = vmatprep.subr.mxu0 0.0
    %1696 = vmatpush1.msra.mxu0 0.0
    %1697 = vmatprep.subr.mxu0 0.0
    %1698 = vmatpush1.msra.mxu0 0.0
    %1699 = vmatprep.subr.mxu0 0.0
    %1700 = vmatpush1.msra.mxu0 0.0
    %1701 = vmatprep.subr.mxu0 0.0
    %1702 = vmatpush1.msra.mxu0 0.0
    %1703 = vmatprep.subr.mxu0 0.0
    %1704 = vmatpush1.msra.mxu0 0.0
    %1705 = vmatprep.subr.mxu0 0.0
    %1706 = vmatpush1.msra.mxu0 0.0
    %1707 = vmatprep.subr.mxu0 0.0
    %1708 = vmatpush1.msra.mxu0 0.0
    %1709 = vmatprep.subr.mxu0 0.0
    %1710 = vmatpush1.msra.mxu0 0.0
    %1711 = vmatprep.subr.mxu0 0.0
    %1712 = vmatpush1.msra.mxu0 0.0
    %1713 = vmatprep.subr.mxu0 0.0
    %1714 = vmatpush1.msra.mxu0 0.0
    %1715 = vmatprep.subr.mxu0 0.0
    %1716 = vmatpush1.msra.mxu0 0.0
    %1717 = vmatprep.subr.mxu0 0.0
    %1718 = vmatpush1.msra.mxu0 0.0
    %1719 = vmatprep.subr.mxu0 0.0
    %1720 = vmatpush1.msra.mxu0 0.0
    %1721 = vmatprep.subr.mxu0 0.0
    %1722 = vmatpush1.msra.mxu0 0.0
    %1723 = vmatprep.subr.mxu0 0.0
    %1724 = vmatpush1.msra.mxu0 0.0
    %1725 = vmatprep.subr.mxu0 0.0
    %1726 = vmatpush1.msra.mxu0 0.0
    %1727 = vmatprep.subr.mxu0 0.0
    %1728 = vmatpush1.msra.mxu0 0.0
    %1729 = vmatprep.subr.mxu0 0.0
    %1730 = vmatpush1.msra.mxu0 0.0
    %1731 = vmatprep.subr.mxu0 0.0
    %1732 = vmatpush1.msra.mxu0 0.0
    %1733 = vmatprep.subr.mxu0 0.0
    %1734 = vmatpush1.msra.mxu0 0.0
    %1735 = vmatprep.mubr.f32.mxu0 0.0
    %1736 = vmatmul.mubr.f32.gmra.mrb[0].mxu0 %v1666
    %v1737 = vpop.f32.mrb[0].mxu0
    %v1738 = vadd.f32 %v1662, %v1737
    %v1739 = vpop.f32.mrb[0].mxu0
    %1740 = vdwg.mxu0
    %s1741 = scalar_lea.vmem %s8, 224
    %v1742 = vld [vmem:[%s1741] sm:$0xff]
    %v1743 = vld [vmem:[%s1741 + $0x8] sm:$0xff]
    %v1744 = vld [vmem:[%s1741 + $0x10] sm:$0xff]
    %v1745 = vld [vmem:[%s1741 + $0x18] sm:$0xff]
    %v1746 = vld [vmem:[%s1741 + $0x20] sm:$0xff]
    %v1747 = vld [vmem:[%s1741 + $0x28] sm:$0xff]
    %v1748 = vld [vmem:[%s1741 + $0x30] sm:$0xff]
    %v1749 = vld [vmem:[%s1741 + $0x38] sm:$0xff]
    %v1750 = vld [vmem:[%s1741 + $0x40] sm:$0xff]
    %v1751 = vld [vmem:[%s1741 + $0x48] sm:$0xff]
    %v1752 = vld [vmem:[%s1741 + $0x50] sm:$0xff]
    %v1753 = vld [vmem:[%s1741 + $0x58] sm:$0xff]
    %v1754 = vld [vmem:[%s1741 + $0x60] sm:$0xff]
    %v1755 = vld [vmem:[%s1741 + $0x68] sm:$0xff]
    %1756 = vmatprep.subr.mxu0 0.0
    %1757 = vmatpush1.msra.mxu0 %v1742
    %1758 = vmatprep.subr.mxu0 0.0
    %1759 = vmatpush1.msra.mxu0 %v1743
    %1760 = vmatprep.subr.mxu0 0.0
    %1761 = vmatpush1.msra.mxu0 %v1744
    %1762 = vmatprep.subr.mxu0 0.0
    %1763 = vmatpush1.msra.mxu0 %v1745
    %1764 = vmatprep.subr.mxu0 0.0
    %1765 = vmatpush1.msra.mxu0 %v1746
    %1766 = vmatprep.subr.mxu0 0.0
    %1767 = vmatpush1.msra.mxu0 %v1747
    %1768 = vmatprep.subr.mxu0 0.0
    %1769 = vmatpush1.msra.mxu0 %v1748
    %1770 = vmatprep.subr.mxu0 0.0
    %1771 = vmatpush1.msra.mxu0 %v1749
    %1772 = vmatprep.subr.mxu0 0.0
    %1773 = vmatpush1.msra.mxu0 %v1750
    %1774 = vmatprep.subr.mxu0 0.0
    %1775 = vmatpush1.msra.mxu0 %v1751
    %1776 = vmatprep.subr.mxu0 0.0
    %1777 = vmatpush1.msra.mxu0 %v1752
    %1778 = vmatprep.subr.mxu0 0.0
    %1779 = vmatpush1.msra.mxu0 %v1753
    %1780 = vmatprep.subr.mxu0 0.0
    %1781 = vmatpush1.msra.mxu0 %v1754
    %1782 = vmatprep.subr.mxu0 0.0
    %1783 = vmatpush1.msra.mxu0 %v1755
    %1784 = vmatprep.subr.mxu0 0.0
    %1785 = vmatpush1.msra.mxu0 0.0
    %1786 = vmatprep.subr.mxu0 0.0
    %1787 = vmatpush1.msra.mxu0 0.0
    %1788 = vmatprep.subr.mxu0 0.0
    %1789 = vmatpush1.msra.mxu0 0.0
    %1790 = vmatprep.subr.mxu0 0.0
    %1791 = vmatpush1.msra.mxu0 0.0
    %1792 = vmatprep.subr.mxu0 0.0
    %1793 = vmatpush1.msra.mxu0 0.0
    %1794 = vmatprep.subr.mxu0 0.0
    %1795 = vmatpush1.msra.mxu0 0.0
    %1796 = vmatprep.subr.mxu0 0.0
    %1797 = vmatpush1.msra.mxu0 0.0
    %1798 = vmatprep.subr.mxu0 0.0
    %1799 = vmatpush1.msra.mxu0 0.0
    %1800 = vmatprep.subr.mxu0 0.0
    %1801 = vmatpush1.msra.mxu0 0.0
    %1802 = vmatprep.subr.mxu0 0.0
    %1803 = vmatpush1.msra.mxu0 0.0
    %1804 = vmatprep.subr.mxu0 0.0
    %1805 = vmatpush1.msra.mxu0 0.0
    %1806 = vmatprep.subr.mxu0 0.0
    %1807 = vmatpush1.msra.mxu0 0.0
    %1808 = vmatprep.subr.mxu0 0.0
    %1809 = vmatpush1.msra.mxu0 0.0
    %1810 = vmatprep.subr.mxu0 0.0
    %1811 = vmatpush1.msra.mxu0 0.0
    %1812 = vmatprep.subr.mxu0 0.0
    %1813 = vmatpush1.msra.mxu0 0.0
    %1814 = vmatprep.subr.mxu0 0.0
    %1815 = vmatpush1.msra.mxu0 0.0
    %1816 = vmatprep.subr.mxu0 0.0
    %1817 = vmatpush1.msra.mxu0 0.0
    %1818 = vmatprep.subr.mxu0 0.0
    %1819 = vmatpush1.msra.mxu0 0.0
    %1820 = vmatprep.mubr.f32.mxu0 0.0
    %1821 = vmatmul.mubr.f32.gmra.mrb[0].mxu0 %v1414
    %v1822 = vpop.f32.mrb[0].mxu0
    %v1823 = vadd.f32 0.0, %v1822
    %v1824 = vpop.f32.mrb[0].mxu0
    %1825 = vmatprep.mubr.f32.mxu0 0.0
    %1826 = vmatmul.mubr.f32.gmra.mrb[0].mxu0 %v1417
    %v1827 = vpop.f32.mrb[0].mxu0
    %v1828 = vadd.f32 0.0, %v1827
    %v1829 = vpop.f32.mrb[0].mxu0
    %1830 = vdwg.mxu0
    %s1831 = scalar_lea.vmem %s7, 16
    %v1832 = vld [vmem:[%s1831] sm:$0x3f]
    %v1834 = vsel %vm1587, %v1832, 0
    %v1837 = vsel %vm1591, %v1828, 0
    %1839 = vmatprep.subr.mxu0 0.0
    %1840 = vmatpush1.msra.mxu0 %v1823
    %1841 = vmatprep.subr.mxu0 0.0
    %1842 = vmatpush1.msra.mxu0 %v1837
    %1843 = vmatprep.subr.mxu0 0.0
    %1844 = vmatpush1.msra.mxu0 0.0
    %1845 = vmatprep.subr.mxu0 0.0
    %1846 = vmatpush1.msra.mxu0 0.0
    %1847 = vmatprep.subr.mxu0 0.0
    %1848 = vmatpush1.msra.mxu0 0.0
    %1849 = vmatprep.subr.mxu0 0.0
    %1850 = vmatpush1.msra.mxu0 0.0
    %1851 = vmatprep.subr.mxu0 0.0
    %1852 = vmatpush1.msra.mxu0 0.0
    %1853 = vmatprep.subr.mxu0 0.0
    %1854 = vmatpush1.msra.mxu0 0.0
    %1855 = vmatprep.subr.mxu0 0.0
    %1856 = vmatpush1.msra.mxu0 0.0
    %1857 = vmatprep.subr.mxu0 0.0
    %1858 = vmatpush1.msra.mxu0 0.0
    %1859 = vmatprep.subr.mxu0 0.0
    %1860 = vmatpush1.msra.mxu0 0.0
    %1861 = vmatprep.subr.mxu0 0.0
    %1862 = vmatpush1.msra.mxu0 0.0
    %1863 = vmatprep.subr.mxu0 0.0
    %1864 = vmatpush1.msra.mxu0 0.0
    %1865 = vmatprep.subr.mxu0 0.0
    %1866 = vmatpush1.msra.mxu0 0.0
    %1867 = vmatprep.subr.mxu0 0.0
    %1868 = vmatpush1.msra.mxu0 0.0
    %1869 = vmatprep.subr.mxu0 0.0
    %1870 = vmatpush1.msra.mxu0 0.0
    %1871 = vmatprep.subr.mxu0 0.0
    %1872 = vmatpush1.msra.mxu0 0.0
    %1873 = vmatprep.subr.mxu0 0.0
    %1874 = vmatpush1.msra.mxu0 0.0
    %1875 = vmatprep.subr.mxu0 0.0
    %1876 = vmatpush1.msra.mxu0 0.0
    %1877 = vmatprep.subr.mxu0 0.0
    %1878 = vmatpush1.msra.mxu0 0.0
    %1879 = vmatprep.subr.mxu0 0.0
    %1880 = vmatpush1.msra.mxu0 0.0
    %1881 = vmatprep.subr.mxu0 0.0
    %1882 = vmatpush1.msra.mxu0 0.0
    %1883 = vmatprep.subr.mxu0 0.0
    %1884 = vmatpush1.msra.mxu0 0.0
    %1885 = vmatprep.subr.mxu0 0.0
    %1886 = vmatpush1.msra.mxu0 0.0
    %1887 = vmatprep.subr.mxu0 0.0
    %1888 = vmatpush1.msra.mxu0 0.0
    %1889 = vmatprep.subr.mxu0 0.0
    %1890 = vmatpush1.msra.mxu0 0.0
    %1891 = vmatprep.subr.mxu0 0.0
    %1892 = vmatpush1.msra.mxu0 0.0
    %1893 = vmatprep.subr.mxu0 0.0
    %1894 = vmatpush1.msra.mxu0 0.0
    %1895 = vmatprep.subr.mxu0 0.0
    %1896 = vmatpush1.msra.mxu0 0.0
    %1897 = vmatprep.subr.mxu0 0.0
    %1898 = vmatpush1.msra.mxu0 0.0
    %1899 = vmatprep.subr.mxu0 0.0
    %1900 = vmatpush1.msra.mxu0 0.0
    %1901 = vmatprep.subr.mxu0 0.0
    %1902 = vmatpush1.msra.mxu0 0.0
    %1903 = vmatprep.mubr.f32.mxu0 0.0
    %1904 = vmatmul.mubr.f32.gmra.mrb[0].mxu0 %v1834
    %v1905 = vpop.f32.mrb[0].mxu0
    %v1906 = vadd.f32 0.0, %v1905
    %v1907 = vpop.f32.mrb[0].mxu0
    %1908 = vdwg.mxu0
    %v1909 = vadd.f32 %v1738, %v1906
    %v1910 = vld [vmem:[#allocation10] sm:$0x1]
    %v1912 = vlaneseq
    %v1913 = vshrl.u32 %v1912, 7
    %v1914 = vsub.s32 0, %v1913
    %v1915 = vrot.slane %v1910, %v1914
    %v1917 = vadd.f32 %v1909, %v1915
    %v1918 = vmax.f32 %v1917, 0.0
    %v1919 = vld [vmem:[#allocation11] sm:$0x3]
    %vm1920 = vcmask 48128
    %v1922 = vsel %vm1920, %v1919, 0
    %v1925 = vsel %vm1591, %v1918, 0
    %1927 = vmatprep.subr.mxu0 0.0
    %1928 = vmatpush1.msra.mxu0 %v1925
    %1929 = vmatprep.subr.mxu0 0.0
    %1930 = vmatpush1.msra.mxu0 0.0
    %1931 = vmatprep.subr.mxu0 0.0
    %1932 = vmatpush1.msra.mxu0 0.0
    %1933 = vmatprep.subr.mxu0 0.0
    %1934 = vmatpush1.msra.mxu0 0.0
    %1935 = vmatprep.subr.mxu0 0.0
    %1936 = vmatpush1.msra.mxu0 0.0
    %1937 = vmatprep.subr.mxu0 0.0
    %1938 = vmatpush1.msra.mxu0 0.0
    %1939 = vmatprep.subr.mxu0 0.0
    %1940 = vmatpush1.msra.mxu0 0.0
    %1941 = vmatprep.subr.mxu0 0.0
    %1942 = vmatpush1.msra.mxu0 0.0
    %1943 = vmatprep.subr.mxu0 0.0
    %1944 = vmatpush1.msra.mxu0 0.0
    %1945 = vmatprep.subr.mxu0 0.0
    %1946 = vmatpush1.msra.mxu0 0.0
    %1947 = vmatprep.subr.mxu0 0.0
    %1948 = vmatpush1.msra.mxu0 0.0
    %1949 = vmatprep.subr.mxu0 0.0
    %1950 = vmatpush1.msra.mxu0 0.0
    %1951 = vmatprep.subr.mxu0 0.0
    %1952 = vmatpush1.msra.mxu0 0.0
    %1953 = vmatprep.subr.mxu0 0.0
    %1954 = vmatpush1.msra.mxu0 0.0
    %1955 = vmatprep.subr.mxu0 0.0
    %1956 = vmatpush1.msra.mxu0 0.0
    %1957 = vmatprep.subr.mxu0 0.0
    %1958 = vmatpush1.msra.mxu0 0.0
    %1959 = vmatprep.subr.mxu0 0.0
    %1960 = vmatpush1.msra.mxu0 0.0
    %1961 = vmatprep.subr.mxu0 0.0
    %1962 = vmatpush1.msra.mxu0 0.0
    %1963 = vmatprep.subr.mxu0 0.0
    %1964 = vmatpush1.msra.mxu0 0.0
    %1965 = vmatprep.subr.mxu0 0.0
    %1966 = vmatpush1.msra.mxu0 0.0
    %1967 = vmatprep.subr.mxu0 0.0
    %1968 = vmatpush1.msra.mxu0 0.0
    %1969 = vmatprep.subr.mxu0 0.0
    %1970 = vmatpush1.msra.mxu0 0.0
    %1971 = vmatprep.subr.mxu0 0.0
    %1972 = vmatpush1.msra.mxu0 0.0
    %1973 = vmatprep.subr.mxu0 0.0
    %1974 = vmatpush1.msra.mxu0 0.0
    %1975 = vmatprep.subr.mxu0 0.0
    %1976 = vmatpush1.msra.mxu0 0.0
    %1977 = vmatprep.subr.mxu0 0.0
    %1978 = vmatpush1.msra.mxu0 0.0
    %1979 = vmatprep.subr.mxu0 0.0
    %1980 = vmatpush1.msra.mxu0 0.0
    %1981 = vmatprep.subr.mxu0 0.0
    %1982 = vmatpush1.msra.mxu0 0.0
    %1983 = vmatprep.subr.mxu0 0.0
    %1984 = vmatpush1.msra.mxu0 0.0
    %1985 = vmatprep.subr.mxu0 0.0
    %1986 = vmatpush1.msra.mxu0 0.0
    %1987 = vmatprep.subr.mxu0 0.0
    %1988 = vmatpush1.msra.mxu0 0.0
    %1989 = vmatprep.subr.mxu0 0.0
    %1990 = vmatpush1.msra.mxu0 0.0
    %1991 = vmatprep.mubr.f32.mxu0 0.0
    %1992 = vmatmul.mubr.f32.gmra.mrb[0].mxu0 %v1922
    %v1993 = vpop.f32.mrb[0].mxu0
    %v1994 = vadd.f32 0.0, %v1993
    %v1995 = vpop.f32.mrb[0].mxu0
    %1996 = vdwg.mxu0
    %v1997 = vld [vmem:[%s11] sm:$0xff]
    %v1998 = vld [vmem:[%s11 + $0x8] sm:$0xff]
    %v1999 = vld [vmem:[%s11 + $0x10] sm:$0xff]
    %v2000 = vld [vmem:[%s11 + $0x18] sm:$0xff]
    %v2001 = vld [vmem:[%s11 + $0x20] sm:$0xff]
    %v2002 = vld [vmem:[%s11 + $0x28] sm:$0xff]
    %v2003 = vld [vmem:[%s11 + $0x30] sm:$0xff]
    %v2004 = vld [vmem:[%s11 + $0x38] sm:$0xff]
    %v2005 = vld [vmem:[%s11 + $0x40] sm:$0xff]
    %v2006 = vld [vmem:[%s11 + $0x48] sm:$0xff]
    %v2007 = vld [vmem:[%s11 + $0x50] sm:$0xff]
    %v2008 = vld [vmem:[%s11 + $0x58] sm:$0xff]
    %s2009 = scalar_lea.vmem [#allocation11], 2
    %v2010 = vld [vmem:[%s2009] sm:$0x3]
    %v2012 = vsel %vm1920, %v2010, 0
    %2014 = vmatprep.subr.mxu0 0.0
    %2015 = vmatpush1.msra.mxu0 %v1925
    %2016 = vmatprep.subr.mxu0 0.0
    %2017 = vmatpush1.msra.mxu0 0.0
    %2018 = vmatprep.subr.mxu0 0.0
    %2019 = vmatpush1.msra.mxu0 0.0
    %2020 = vmatprep.subr.mxu0 0.0
    %2021 = vmatpush1.msra.mxu0 0.0
    %2022 = vmatprep.subr.mxu0 0.0
    %2023 = vmatpush1.msra.mxu0 0.0
    %2024 = vmatprep.subr.mxu0 0.0
    %2025 = vmatpush1.msra.mxu0 0.0
    %2026 = vmatprep.subr.mxu0 0.0
    %2027 = vmatpush1.msra.mxu0 0.0
    %2028 = vmatprep.subr.mxu0 0.0
    %2029 = vmatpush1.msra.mxu0 0.0
    %2030 = vmatprep.subr.mxu0 0.0
    %2031 = vmatpush1.msra.mxu0 0.0
    %2032 = vmatprep.subr.mxu0 0.0
    %2033 = vmatpush1.msra.mxu0 0.0
    %2034 = vmatprep.subr.mxu0 0.0
    %2035 = vmatpush1.msra.mxu0 0.0
    %2036 = vmatprep.subr.mxu0 0.0
    %2037 = vmatpush1.msra.mxu0 0.0
    %2038 = vmatprep.subr.mxu0 0.0
    %2039 = vmatpush1.msra.mxu0 0.0
    %2040 = vmatprep.subr.mxu0 0.0
    %2041 = vmatpush1.msra.mxu0 0.0
    %2042 = vmatprep.subr.mxu0 0.0
    %2043 = vmatpush1.msra.mxu0 0.0
    %2044 = vmatprep.subr.mxu0 0.0
    %2045 = vmatpush1.msra.mxu0 0.0
    %2046 = vmatprep.subr.mxu0 0.0
    %2047 = vmatpush1.msra.mxu0 0.0
    %2048 = vmatprep.subr.mxu0 0.0
    %2049 = vmatpush1.msra.mxu0 0.0
    %2050 = vmatprep.subr.mxu0 0.0
    %2051 = vmatpush1.msra.mxu0 0.0
    %2052 = vmatprep.subr.mxu0 0.0
    %2053 = vmatpush1.msra.mxu0 0.0
    %2054 = vmatprep.subr.mxu0 0.0
    %2055 = vmatpush1.msra.mxu0 0.0
    %2056 = vmatprep.subr.mxu0 0.0
    %2057 = vmatpush1.msra.mxu0 0.0
    %2058 = vmatprep.subr.mxu0 0.0
    %2059 = vmatpush1.msra.mxu0 0.0
    %2060 = vmatprep.subr.mxu0 0.0
    %2061 = vmatpush1.msra.mxu0 0.0
    %2062 = vmatprep.subr.mxu0 0.0
    %2063 = vmatpush1.msra.mxu0 0.0
    %2064 = vmatprep.subr.mxu0 0.0
    %2065 = vmatpush1.msra.mxu0 0.0
    %2066 = vmatprep.subr.mxu0 0.0
    %2067 = vmatpush1.msra.mxu0 0.0
    %2068 = vmatprep.subr.mxu0 0.0
    %2069 = vmatpush1.msra.mxu0 0.0
    %2070 = vmatprep.subr.mxu0 0.0
    %2071 = vmatpush1.msra.mxu0 0.0
    %2072 = vmatprep.subr.mxu0 0.0
    %2073 = vmatpush1.msra.mxu0 0.0
    %2074 = vmatprep.subr.mxu0 0.0
    %2075 = vmatpush1.msra.mxu0 0.0
    %2076 = vmatprep.subr.mxu0 0.0
    %2077 = vmatpush1.msra.mxu0 0.0
    %2078 = vmatprep.mubr.f32.mxu0 0.0
    %2079 = vmatmul.mubr.f32.gmra.mrb[0].mxu0 %v2012
    %v2080 = vpop.f32.mrb[0].mxu0
    %v2081 = vadd.f32 0.0, %v2080
    %v2082 = vpop.f32.mrb[0].mxu0
    %2083 = vdwg.mxu0
    %s2084 = scalar_lea.vmem %s11, 96
    %v2085 = vld [vmem:[%s2084] sm:$0xff]
    %v2086 = vld [vmem:[%s2084 + $0x8] sm:$0xff]
    %v2087 = vld [vmem:[%s2084 + $0x10] sm:$0xff]
    %v2088 = vld [vmem:[%s2084 + $0x18] sm:$0xff]
    %v2089 = vld [vmem:[%s2084 + $0x20] sm:$0xff]
    %v2090 = vld [vmem:[%s2084 + $0x28] sm:$0xff]
    %v2091 = vld [vmem:[%s2084 + $0x30] sm:$0xff]
    %v2092 = vld [vmem:[%s2084 + $0x38] sm:$0xff]
    %v2093 = vld [vmem:[%s2084 + $0x40] sm:$0xff]
    %v2094 = vld [vmem:[%s2084 + $0x48] sm:$0xff]
    %v2095 = vld [vmem:[%s2084 + $0x50] sm:$0xff]
    %v2096 = vld [vmem:[%s2084 + $0x58] sm:$0xff]
    %vm2097 = vcmask 785408
    %v2099 = vsel %vm2097, %v2081, 0
    %2101 = vmatprep.subr.mxu0 0.0
    %2102 = vmatpush1.msra.mxu0 %v2085
    %2103 = vmatprep.subr.mxu0 0.0
    %2104 = vmatpush1.msra.mxu0 %v2086
    %2105 = vmatprep.subr.mxu0 0.0
    %2106 = vmatpush1.msra.mxu0 %v2087
    %2107 = vmatprep.subr.mxu0 0.0
    %2108 = vmatpush1.msra.mxu0 %v2088
    %2109 = vmatprep.subr.mxu0 0.0
    %2110 = vmatpush1.msra.mxu0 %v2089
    %2111 = vmatprep.subr.mxu0 0.0
    %2112 = vmatpush1.msra.mxu0 %v2090
    %2113 = vmatprep.subr.mxu0 0.0
    %2114 = vmatpush1.msra.mxu0 %v2091
    %2115 = vmatprep.subr.mxu0 0.0
    %2116 = vmatpush1.msra.mxu0 %v2092
    %2117 = vmatprep.subr.mxu0 0.0
    %2118 = vmatpush1.msra.mxu0 %v2093
    %2119 = vmatprep.subr.mxu0 0.0
    %2120 = vmatpush1.msra.mxu0 %v2094
    %2121 = vmatprep.subr.mxu0 0.0
    %2122 = vmatpush1.msra.mxu0 %v2095
    %2123 = vmatprep.subr.mxu0 0.0
    %2124 = vmatpush1.msra.mxu0 %v2096
    %2125 = vmatprep.subr.mxu0 0.0
    %2126 = vmatpush1.msra.mxu0 0.0
    %2127 = vmatprep.subr.mxu0 0.0
    %2128 = vmatpush1.msra.mxu0 0.0
    %2129 = vmatprep.subr.mxu0 0.0
    %2130 = vmatpush1.msra.mxu0 0.0
    %2131 = vmatprep.subr.mxu0 0.0
    %2132 = vmatpush1.msra.mxu0 0.0
    %2133 = vmatprep.subr.mxu0 0.0
    %2134 = vmatpush1.msra.mxu0 0.0
    %2135 = vmatprep.subr.mxu0 0.0
    %2136 = vmatpush1.msra.mxu0 0.0
    %2137 = vmatprep.subr.mxu0 0.0
    %2138 = vmatpush1.msra.mxu0 0.0
    %2139 = vmatprep.subr.mxu0 0.0
    %2140 = vmatpush1.msra.mxu0 0.0
    %2141 = vmatprep.subr.mxu0 0.0
    %2142 = vmatpush1.msra.mxu0 0.0
    %2143 = vmatprep.subr.mxu0 0.0
    %2144 = vmatpush1.msra.mxu0 0.0
    %2145 = vmatprep.subr.mxu0 0.0
    %2146 = vmatpush1.msra.mxu0 0.0
    %2147 = vmatprep.subr.mxu0 0.0
    %2148 = vmatpush1.msra.mxu0 0.0
    %2149 = vmatprep.subr.mxu0 0.0
    %2150 = vmatpush1.msra.mxu0 0.0
    %2151 = vmatprep.subr.mxu0 0.0
    %2152 = vmatpush1.msra.mxu0 0.0
    %2153 = vmatprep.subr.mxu0 0.0
    %2154 = vmatpush1.msra.mxu0 0.0
    %2155 = vmatprep.subr.mxu0 0.0
    %2156 = vmatpush1.msra.mxu0 0.0
    %2157 = vmatprep.subr.mxu0 0.0
    %2158 = vmatpush1.msra.mxu0 0.0
    %2159 = vmatprep.subr.mxu0 0.0
    %2160 = vmatpush1.msra.mxu0 0.0
    %2161 = vmatprep.subr.mxu0 0.0
    %2162 = vmatpush1.msra.mxu0 0.0
    %2163 = vmatprep.subr.mxu0 0.0
    %2164 = vmatpush1.msra.mxu0 0.0
    %2165 = vmatprep.mubr.f32.mxu0 0.0
    %2166 = vmatmul.mubr.f32.gmra.mrb[0].mxu0 %v2099
    %v2167 = vpop.f32.mrb[0].mxu0
    %v2168 = vadd.f32 0.0, %v2167
    %v2169 = vpop.f32.mrb[0].mxu0
    %2170 = vdwg.mxu0
    %v2172 = vsel %vm2097, %v1994, 0
    %2174 = vmatprep.subr.mxu0 0.0
    %2175 = vmatpush1.msra.mxu0 %v1997
    %2176 = vmatprep.subr.mxu0 0.0
    %2177 = vmatpush1.msra.mxu0 %v1998
    %2178 = vmatprep.subr.mxu0 0.0
    %2179 = vmatpush1.msra.mxu0 %v1999
    %2180 = vmatprep.subr.mxu0 0.0
    %2181 = vmatpush1.msra.mxu0 %v2000
    %2182 = vmatprep.subr.mxu0 0.0
    %2183 = vmatpush1.msra.mxu0 %v2001
    %2184 = vmatprep.subr.mxu0 0.0
    %2185 = vmatpush1.msra.mxu0 %v2002
    %2186 = vmatprep.subr.mxu0 0.0
    %2187 = vmatpush1.msra.mxu0 %v2003
    %2188 = vmatprep.subr.mxu0 0.0
    %2189 = vmatpush1.msra.mxu0 %v2004
    %2190 = vmatprep.subr.mxu0 0.0
    %2191 = vmatpush1.msra.mxu0 %v2005
    %2192 = vmatprep.subr.mxu0 0.0
    %2193 = vmatpush1.msra.mxu0 %v2006
    %2194 = vmatprep.subr.mxu0 0.0
    %2195 = vmatpush1.msra.mxu0 %v2007
    %2196 = vmatprep.subr.mxu0 0.0
    %2197 = vmatpush1.msra.mxu0 %v2008
    %2198 = vmatprep.subr.mxu0 0.0
    %2199 = vmatpush1.msra.mxu0 0.0
    %2200 = vmatprep.subr.mxu0 0.0
    %2201 = vmatpush1.msra.mxu0 0.0
    %2202 = vmatprep.subr.mxu0 0.0
    %2203 = vmatpush1.msra.mxu0 0.0
    %2204 = vmatprep.subr.mxu0 0.0
    %2205 = vmatpush1.msra.mxu0 0.0
    %2206 = vmatprep.subr.mxu0 0.0
    %2207 = vmatpush1.msra.mxu0 0.0
    %2208 = vmatprep.subr.mxu0 0.0
    %2209 = vmatpush1.msra.mxu0 0.0
    %2210 = vmatprep.subr.mxu0 0.0
    %2211 = vmatpush1.msra.mxu0 0.0
    %2212 = vmatprep.subr.mxu0 0.0
    %2213 = vmatpush1.msra.mxu0 0.0
    %2214 = vmatprep.subr.mxu0 0.0
    %2215 = vmatpush1.msra.mxu0 0.0
    %2216 = vmatprep.subr.mxu0 0.0
    %2217 = vmatpush1.msra.mxu0 0.0
    %2218 = vmatprep.subr.mxu0 0.0
    %2219 = vmatpush1.msra.mxu0 0.0
    %2220 = vmatprep.subr.mxu0 0.0
    %2221 = vmatpush1.msra.mxu0 0.0
    %2222 = vmatprep.subr.mxu0 0.0
    %2223 = vmatpush1.msra.mxu0 0.0
    %2224 = vmatprep.subr.mxu0 0.0
    %2225 = vmatpush1.msra.mxu0 0.0
    %2226 = vmatprep.subr.mxu0 0.0
    %2227 = vmatpush1.msra.mxu0 0.0
    %2228 = vmatprep.subr.mxu0 0.0
    %2229 = vmatpush1.msra.mxu0 0.0
    %2230 = vmatprep.subr.mxu0 0.0
    %2231 = vmatpush1.msra.mxu0 0.0
    %2232 = vmatprep.subr.mxu0 0.0
    %2233 = vmatpush1.msra.mxu0 0.0
    %2234 = vmatprep.subr.mxu0 0.0
    %2235 = vmatpush1.msra.mxu0 0.0
    %2236 = vmatprep.subr.mxu0 0.0
    %2237 = vmatpush1.msra.mxu0 0.0
    %2238 = vmatprep.mubr.f32.mxu0 0.0
    %2239 = vmatmul.mubr.f32.gmra.mrb[0].mxu0 %v2172
    %v2240 = vpop.f32.mrb[0].mxu0
    %v2241 = vadd.f32 %v2168, %v2240
    %v2242 = vpop.f32.mrb[0].mxu0
    %2243 = vdwg.mxu0
    %s2244 = scalar_lea.vmem [#allocation11], 4
    %v2245 = vld [vmem:[%s2244] sm:$0x3]
    %v2247 = vsel %vm1920, %v2245, 0
    %2249 = vmatprep.subr.mxu0 0.0
    %2250 = vmatpush1.msra.mxu0 %v1925
    %2251 = vmatprep.subr.mxu0 0.0
    %2252 = vmatpush1.msra.mxu0 0.0
    %2253 = vmatprep.subr.mxu0 0.0
    %2254 = vmatpush1.msra.mxu0 0.0
    %2255 = vmatprep.subr.mxu0 0.0
    %2256 = vmatpush1.msra.mxu0 0.0
    %2257 = vmatprep.subr.mxu0 0.0
    %2258 = vmatpush1.msra.mxu0 0.0
    %2259 = vmatprep.subr.mxu0 0.0
    %2260 = vmatpush1.msra.mxu0 0.0
    %2261 = vmatprep.subr.mxu0 0.0
    %2262 = vmatpush1.msra.mxu0 0.0
    %2263 = vmatprep.subr.mxu0 0.0
    %2264 = vmatpush1.msra.mxu0 0.0
    %2265 = vmatprep.subr.mxu0 0.0
    %2266 = vmatpush1.msra.mxu0 0.0
    %2267 = vmatprep.subr.mxu0 0.0
    %2268 = vmatpush1.msra.mxu0 0.0
    %2269 = vmatprep.subr.mxu0 0.0
    %2270 = vmatpush1.msra.mxu0 0.0
    %2271 = vmatprep.subr.mxu0 0.0
    %2272 = vmatpush1.msra.mxu0 0.0
    %2273 = vmatprep.subr.mxu0 0.0
    %2274 = vmatpush1.msra.mxu0 0.0
    %2275 = vmatprep.subr.mxu0 0.0
    %2276 = vmatpush1.msra.mxu0 0.0
    %2277 = vmatprep.subr.mxu0 0.0
    %2278 = vmatpush1.msra.mxu0 0.0
    %2279 = vmatprep.subr.mxu0 0.0
    %2280 = vmatpush1.msra.mxu0 0.0
    %2281 = vmatprep.subr.mxu0 0.0
    %2282 = vmatpush1.msra.mxu0 0.0
    %2283 = vmatprep.subr.mxu0 0.0
    %2284 = vmatpush1.msra.mxu0 0.0
    %2285 = vmatprep.subr.mxu0 0.0
    %2286 = vmatpush1.msra.mxu0 0.0
    %2287 = vmatprep.subr.mxu0 0.0
    %2288 = vmatpush1.msra.mxu0 0.0
    %2289 = vmatprep.subr.mxu0 0.0
    %2290 = vmatpush1.msra.mxu0 0.0
    %2291 = vmatprep.subr.mxu0 0.0
    %2292 = vmatpush1.msra.mxu0 0.0
    %2293 = vmatprep.subr.mxu0 0.0
    %2294 = vmatpush1.msra.mxu0 0.0
    %2295 = vmatprep.subr.mxu0 0.0
    %2296 = vmatpush1.msra.mxu0 0.0
    %2297 = vmatprep.subr.mxu0 0.0
    %2298 = vmatpush1.msra.mxu0 0.0
    %2299 = vmatprep.subr.mxu0 0.0
    %2300 = vmatpush1.msra.mxu0 0.0
    %2301 = vmatprep.subr.mxu0 0.0
    %2302 = vmatpush1.msra.mxu0 0.0
    %2303 = vmatprep.subr.mxu0 0.0
    %2304 = vmatpush1.msra.mxu0 0.0
    %2305 = vmatprep.subr.mxu0 0.0
    %2306 = vmatpush1.msra.mxu0 0.0
    %2307 = vmatprep.subr.mxu0 0.0
    %2308 = vmatpush1.msra.mxu0 0.0
    %2309 = vmatprep.subr.mxu0 0.0
    %2310 = vmatpush1.msra.mxu0 0.0
    %2311 = vmatprep.subr.mxu0 0.0
    %2312 = vmatpush1.msra.mxu0 0.0
    %2313 = vmatprep.mubr.f32.mxu0 0.0
    %2314 = vmatmul.mubr.f32.gmra.mrb[0].mxu0 %v2247
    %v2315 = vpop.f32.mrb[0].mxu0
    %v2316 = vadd.f32 0.0, %v2315
    %v2317 = vpop.f32.mrb[0].mxu0
    %2318 = vdwg.mxu0
    %s2319 = scalar_lea.vmem %s11, 192
    %v2320 = vld [vmem:[%s2319] sm:$0xff]
    %v2321 = vld [vmem:[%s2319 + $0x8] sm:$0xff]
    %v2322 = vld [vmem:[%s2319 + $0x10] sm:$0xff]
    %v2323 = vld [vmem:[%s2319 + $0x18] sm:$0xff]
    %v2324 = vld [vmem:[%s2319 + $0x20] sm:$0xff]
    %v2325 = vld [vmem:[%s2319 + $0x28] sm:$0xff]
    %v2326 = vld [vmem:[%s2319 + $0x30] sm:$0xff]
    %v2327 = vld [vmem:[%s2319 + $0x38] sm:$0xff]
    %v2328 = vld [vmem:[%s2319 + $0x40] sm:$0xff]
    %v2329 = vld [vmem:[%s2319 + $0x48] sm:$0xff]
    %v2330 = vld [vmem:[%s2319 + $0x50] sm:$0xff]
    %v2331 = vld [vmem:[%s2319 + $0x58] sm:$0xff]
    %v2333 = vsel %vm2097, %v2316, 0
    %2335 = vmatprep.subr.mxu0 0.0
    %2336 = vmatpush1.msra.mxu0 %v2320
    %2337 = vmatprep.subr.mxu0 0.0
    %2338 = vmatpush1.msra.mxu0 %v2321
    %2339 = vmatprep.subr.mxu0 0.0
    %2340 = vmatpush1.msra.mxu0 %v2322
    %2341 = vmatprep.subr.mxu0 0.0
    %2342 = vmatpush1.msra.mxu0 %v2323
    %2343 = vmatprep.subr.mxu0 0.0
    %2344 = vmatpush1.msra.mxu0 %v2324
    %2345 = vmatprep.subr.mxu0 0.0
    %2346 = vmatpush1.msra.mxu0 %v2325
    %2347 = vmatprep.subr.mxu0 0.0
    %2348 = vmatpush1.msra.mxu0 %v2326
    %2349 = vmatprep.subr.mxu0 0.0
    %2350 = vmatpush1.msra.mxu0 %v2327
    %2351 = vmatprep.subr.mxu0 0.0
    %2352 = vmatpush1.msra.mxu0 %v2328
    %2353 = vmatprep.subr.mxu0 0.0
    %2354 = vmatpush1.msra.mxu0 %v2329
    %2355 = vmatprep.subr.mxu0 0.0
    %2356 = vmatpush1.msra.mxu0 %v2330
    %2357 = vmatprep.subr.mxu0 0.0
    %2358 = vmatpush1.msra.mxu0 %v2331
    %2359 = vmatprep.subr.mxu0 0.0
    %2360 = vmatpush1.msra.mxu0 0.0
    %2361 = vmatprep.subr.mxu0 0.0
    %2362 = vmatpush1.msra.mxu0 0.0
    %2363 = vmatprep.subr.mxu0 0.0
    %2364 = vmatpush1.msra.mxu0 0.0
    %2365 = vmatprep.subr.mxu0 0.0
    %2366 = vmatpush1.msra.mxu0 0.0
    %2367 = vmatprep.subr.mxu0 0.0
    %2368 = vmatpush1.msra.mxu0 0.0
    %2369 = vmatprep.subr.mxu0 0.0
    %2370 = vmatpush1.msra.mxu0 0.0
    %2371 = vmatprep.subr.mxu0 0.0
    %2372 = vmatpush1.msra.mxu0 0.0
    %2373 = vmatprep.subr.mxu0 0.0
    %2374 = vmatpush1.msra.mxu0 0.0
    %2375 = vmatprep.subr.mxu0 0.0
    %2376 = vmatpush1.msra.mxu0 0.0
    %2377 = vmatprep.subr.mxu0 0.0
    %2378 = vmatpush1.msra.mxu0 0.0
    %2379 = vmatprep.subr.mxu0 0.0
    %2380 = vmatpush1.msra.mxu0 0.0
    %2381 = vmatprep.subr.mxu0 0.0
    %2382 = vmatpush1.msra.mxu0 0.0
    %2383 = vmatprep.subr.mxu0 0.0
    %2384 = vmatpush1.msra.mxu0 0.0
    %2385 = vmatprep.subr.mxu0 0.0
    %2386 = vmatpush1.msra.mxu0 0.0
    %2387 = vmatprep.subr.mxu0 0.0
    %2388 = vmatpush1.msra.mxu0 0.0
    %2389 = vmatprep.subr.mxu0 0.0
    %2390 = vmatpush1.msra.mxu0 0.0
    %2391 = vmatprep.subr.mxu0 0.0
    %2392 = vmatpush1.msra.mxu0 0.0
    %2393 = vmatprep.subr.mxu0 0.0
    %2394 = vmatpush1.msra.mxu0 0.0
    %2395 = vmatprep.subr.mxu0 0.0
    %2396 = vmatpush1.msra.mxu0 0.0
    %2397 = vmatprep.subr.mxu0 0.0
    %2398 = vmatpush1.msra.mxu0 0.0
    %2399 = vmatprep.mubr.f32.mxu0 0.0
    %2400 = vmatmul.mubr.f32.gmra.mrb[0].mxu0 %v2333
    %v2401 = vpop.f32.mrb[0].mxu0
    %v2402 = vadd.f32 0.0, %v2401
    %v2403 = vpop.f32.mrb[0].mxu0
    %2404 = vdwg.mxu0
    %v2405 = vadd.f32 %v2241, %v2402
    %v2406 = vld [vmem:[#allocation13] sm:$0x1]
    %v2408 = vlaneseq
    %v2409 = vshrl.u32 %v2408, 7
    %v2410 = vsub.s32 0, %v2409
    %v2411 = vrot.slane %v2406, %v2410
    %v2413 = vadd.f32 %v2405, %v2411
    %v2414 = vmax.f32 %v2413, 0.0
    %2415 = vst [vmem:[#allocation14] sm:$0x3] %v2414
    // Predicated region
    $region82: #{encoder_forward.1} parent=1 // pred_check
      _
    $region83: #{encoder_forward.1} parent=1 // pred_check_branch
      %2417 = sbr.rel (0) target = $region85
    $region84: #{encoder_forward.1} parent=1 // pred_region
      %s2419 = ssub.s32 32, 32
      %2420 = vsyncadd [#allocation4], %s2419
      %s2422 = sshll.u32 [#allocation14], 4
      %s2423 = int_to_ptr.vmem [resolvable:$true] %s2422
      %2425 = dma.vmem_to_hbm [thread:$0]  %s2423, 32, %s13, [#allocation4]
    $region85: #{encoder_forward.1} parent=1 // pred_fallthru
      _
    // Predicated region
    $region86: #{encoder_forward.1} parent=1 // pred_check
      _
    $region87: #{encoder_forward.1} parent=1 // pred_check_branch
      %2427 = sbr.rel (0) target = $region89
    $region88: #{encoder_forward.1} parent=1 // pred_region
      %2428 = dma.done [#allocation4], 32
    $region89: #{encoder_forward.1} parent=1 // pred_fallthru
      _
    %2429 = vsyncpa [#allocation3], 1
    %2430 = vsyncpa [#allocation6], 1
    %2431 = vsyncpa [#allocation9], 1
    %2432 = vsyncpa [#allocation12], 1
    %2433 = vsyncpa [#allocation4], 1

</llo_original>
